<compile_context>
chip_gen: v7x
topology: tpu7x:2x2x1
jax: 0.10.0
libtpu: 0.0.40
codegen_flags: <defaults>
</compile_context>

<pallas_src>
import numpy as np
import jax
import jax.numpy as jnp
from jax.experimental import pallas as pl
from jax.experimental.pallas import tpu as pltpu


def _kinematics_kernel(angles_t_ref, tri2_ref, p_ref, phase_ref, out_ref):
    # angles_t_ref : (J,  TB)  batch tile of joint angles, batch on lanes
    # tri2_ref     : (2J, J)   duplicated inclusive-prefix matrix (grid-resident)
    # p_ref        : (2J, 2J)  fused prefix-sum + interleave + link scaling
    # phase_ref    : (2J, 1)   0 on even rows, -pi/2 on odd rows
    # out_ref      : (2J, TB)  lane-dense transposed output tile

    # cum2[r, b] = sum_{k <= r//2} angles[b, k]
    cum2 = jnp.dot(tri2_ref[...], angles_t_ref[...],
                   preferred_element_type=jnp.float32,
                   precision=jax.lax.Precision.HIGHEST)        # (2J, TB)

    # even row 2i  : cos(cum_i)            -> dx_i / links[i]
    # odd  row 2i+1: cos(cum_i - pi/2)     -> sin(cum_i) = dy_i / links[i]
    dxy = jnp.cos(cum2 + phase_ref[...])                       # (2J, TB)

    # One MXU matmul: link scaling + both cumulative-position prefix sums
    # + the [x0, y0, x1, y1, ...] interleave.  Lane-dense store, no transpose.
    out_ref[...] = jnp.dot(p_ref[...], dxy,
                           preferred_element_type=jnp.float32,
                           precision=jax.lax.Precision.HIGHEST)


def _constants(num_joints, links):
    """Loop-invariant selector matrices (links folded into P)."""
    J = num_joints
    J2 = 2 * J
    r = np.arange(J2)[:, None]
    k = np.arange(J)[None, :]
    tri2 = (k <= r // 2).astype(np.float32)                                   # (2J, J)
    c = np.arange(J2)[None, :]
    p = (((r % 2) == (c % 2)) & ((c // 2) <= (r // 2))).astype(np.float32)    # (2J, 2J)
    phase = np.where(np.arange(J2) % 2 == 0, 0.0, -np.pi / 2.0)
    phase = phase.astype(np.float32).reshape(J2, 1)                           # (2J, 1)

    links2 = jnp.repeat(links.astype(jnp.float32), 2)                         # (2J,) links[c//2]
    p_scaled = jnp.asarray(p) * links2[None, :]                               # column scaling
    return jnp.asarray(tri2), p_scaled, jnp.asarray(phase)


def _pick_batch_tile(B, cap):
    """Lane-axis tile: multiple of 128, aiming for >= 4 grid steps (v7x dual-TC)."""
    target = -(-B // 4)                      # cdiv(B, 4)
    target = -(-target // 128) * 128         # round up to 128
    return max(128, min(cap, target))


def _reference_forward(angles, links):
    """Pure-JAX mirror of the PyTorch loop (also the tiny-batch fast path)."""
    cum_angle = jnp.cumsum(angles, axis=1)
    dx = links[None, :] * jnp.cos(cum_angle)
    dy = links[None, :] * jnp.sin(cum_angle)
    px = jnp.cumsum(dx, axis=1)
    py = jnp.cumsum(dy, axis=1)
    return jnp.stack([px, py], axis=-1).reshape(angles.shape[0], -1)


def kinematics_forward(angles, links, *, batch_tile=4096, use_pallas=None):
    """angles: (B, J) f32, links: (J,) f32 -> (B, 2*J) f32 (x/y interleaved)."""
    B, J = angles.shape
    J2 = 2 * J
    angles = angles.astype(jnp.float32)
    links = links.astype(jnp.float32)

    # Small-batch fast path: at B ~ 2 the whole problem is < 1 KB and kernel
    # launch overhead dominates; a pure-JAX cumsum is strictly cheaper.
    if use_pallas is None:
        use_pallas = B >= 256
    if not use_pallas:
        return _reference_forward(angles, links)

    tri2, p_scaled, phase = _constants(J, links)

    tb = _pick_batch_tile(B, batch_tile)
    grid = (pl.cdiv(B, tb),)

    out_t = pl.pallas_call(
        _kinematics_kernel,
        out_shape=jax.ShapeDtypeStruct((J2, B), jnp.float32),   # lane-dense (2J, B)
        grid_spec=pltpu.PrefetchScalarGridSpec(
            num_scalar_prefetch=0,
            grid=grid,
            in_specs=[
                pl.BlockSpec((J, tb), lambda i: (0, i)),     # angles^T: tiled over batch lanes
                pl.BlockSpec((J2, J), lambda i: (0, 0)),     # tri2    : grid-resident
                pl.BlockSpec((J2, J2), lambda i: (0, 0)),    # P_scaled: grid-resident
                pl.BlockSpec((J2, 1), lambda i: (0, 0)),     # phase   : grid-resident
            ],
            out_specs=pl.BlockSpec((J2, tb), lambda i: (0, i)),
        ),
        compiler_params=pltpu.CompilerParams(
            # Batch tiles are independent; on v7x this shards the >=4-step grid
            # across both TensorCores, neutral on single-TC v5e/v6e.
            dimension_semantics=("parallel",),
        ),
    )(angles.T, tri2, p_scaled, phase)

    # Callers of the PyTorch module expect (B, 2J); cheap XLA re-layout.
    return out_t.T


if __name__ == "__main__":
    num_joints = 14

    key = jax.random.PRNGKey(0)
    k_links, k_small, k_mid, k_big = jax.random.split(key, 4)

    # Deterministic parameter init (matches nn.Parameter(torch.randn(num_joints))).
    links = jax.random.normal(k_links, (num_joints,), dtype=jnp.float32)

    # Production-like tiny batch (B=2, J=14) -> pure-JAX fast path.
    angles_small = jax.random.normal(k_small, (2, num_joints), dtype=jnp.float32)
    out_small = jax.block_until_ready(kinematics_forward(angles_small, links))
    ref_small = _reference_forward(angles_small, links)
    assert out_small.shape == (2, 2 * num_joints)
    assert jnp.allclose(out_small, ref_small, atol=2e-4, rtol=2e-4)

    # Ragged batch (B not a multiple of the 128-wide lane tile), forced through Pallas.
    angles_mid = jax.random.normal(k_mid, (300, num_joints), dtype=jnp.float32)
    out_mid = jax.block_until_ready(
        kinematics_forward(angles_mid, links, use_pallas=True))
    ref_mid = _reference_forward(angles_mid, links)
    assert out_mid.shape == (300, 2 * num_joints)
    assert jnp.allclose(out_mid, ref_mid, atol=2e-4, rtol=2e-4)

    # Larger batch exercising the tiled / software-pipelined grid (4 parallel steps).
    angles_big = jax.random.normal(k_big, (2048, num_joints), dtype=jnp.float32)
    out_big = jax.block_until_ready(kinematics_forward(angles_big, links))
    ref_big = _reference_forward(angles_big, links)
    assert out_big.shape == (2048, 2 * num_joints)
    assert jnp.allclose(out_big, ref_big, atol=2e-4, rtol=2e-4)

    print("KERNEL_OK")
</pallas_src>

<mosaic_0001>
module attributes {stable_mosaic.version = 11 : i64} {
  func.func @_kinematics_kernel(%arg0: i32, %arg1: memref<14x128xf32, #tpu.memory_space<vmem>>, %arg2: memref<28x14xf32, #tpu.memory_space<vmem>>, %arg3: memref<28x28xf32, #tpu.memory_space<vmem>>, %arg4: memref<28x1xf32, #tpu.memory_space<vmem>>, %arg5: memref<28x128xf32, #tpu.memory_space<vmem>>) attributes {dimension_semantics = [#tpu.dimension_semantics<parallel>], iteration_bounds = array<i64: 3>, scalar_prefetch = 0 : i64, scratch_operands = 0 : i64, tpu.core_type = #tpu.core_type<tc>, window_params = [{transform_indices = @transform_0, window_bounds = array<i64: 14, 128>}, {pipeline_mode = #tpu.pipeline_mode<synchronous>, transform_indices = @transform_1, window_bounds = array<i64: 28, 14>}, {pipeline_mode = #tpu.pipeline_mode<synchronous>, transform_indices = @transform_2, window_bounds = array<i64: 28, 28>}, {pipeline_mode = #tpu.pipeline_mode<synchronous>, transform_indices = @transform_3, window_bounds = array<i64: 28, 1>}, {transform_indices = @transform_4, window_bounds = array<i64: 28, 128>}]} {
    %c0 = arith.constant 0 : index
    %c0_0 = arith.constant 0 : index
    %0 = vector.load %arg2[%c0, %c0_0] : memref<28x14xf32, #tpu.memory_space<vmem>>, vector<28x14xf32>
    %c0_1 = arith.constant 0 : index
    %c0_2 = arith.constant 0 : index
    %1 = vector.load %arg1[%c0_1, %c0_2] : memref<14x128xf32, #tpu.memory_space<vmem>>, vector<14x128xf32>
    %cst = arith.constant dense<0.000000e+00> : vector<28x128xf32>
    %2 = tpu.matmul %0, %1, %cst {dimension_numbers = #tpu.dot_dimension_numbers<[1], [0], [0], [1], [0, 0, 1, 1], [], []>, precision = #tpu.contract_precision<fp32>} : vector<28x14xf32>, vector<14x128xf32>, vector<28x128xf32> -> vector<28x128xf32>
    %c0_3 = arith.constant 0 : index
    %c0_4 = arith.constant 0 : index
    %3 = vector.load %arg4[%c0_3, %c0_4] : memref<28x1xf32, #tpu.memory_space<vmem>>, vector<28x1xf32>
    %4 = vector.broadcast %3 : vector<28x1xf32> to vector<28x128xf32>
    %5 = arith.addf %2, %4 : vector<28x128xf32>
    %6 = math.cos %5 : vector<28x128xf32>
    %c0_5 = arith.constant 0 : index
    %c0_6 = arith.constant 0 : index
    %7 = vector.load %arg3[%c0_5, %c0_6] : memref<28x28xf32, #tpu.memory_space<vmem>>, vector<28x28xf32>
    %cst_7 = arith.constant dense<0.000000e+00> : vector<28x128xf32>
    %8 = tpu.matmul %7, %6, %cst_7 {dimension_numbers = #tpu.dot_dimension_numbers<[1], [0], [0], [1], [0, 0, 1, 1], [], []>, precision = #tpu.contract_precision<fp32>} : vector<28x28xf32>, vector<28x128xf32>, vector<28x128xf32> -> vector<28x128xf32>
    %c0_8 = arith.constant 0 : index
    %c0_9 = arith.constant 0 : index
    %9 = vector.load %arg5[%c0_8, %c0_9] : memref<28x128xf32, #tpu.memory_space<vmem>>, vector<28x128xf32>
    tpu.vector_store %arg5[%c0_8, %c0_9], %8 {strides = array<i32>} : memref<28x128xf32, #tpu.memory_space<vmem>>, vector<28x128xf32>,
    return
  }
  func.func @transform_0(%arg0: i32) -> (i32, i32) {
    %c0_i32 = arith.constant 0 : i32
    %c0_i32_0 = arith.constant 0 : i32
    return %c0_i32, %arg0 : i32, i32
  }
  func.func @transform_1(%arg0: i32) -> (i32, i32) {
    %c0_i32 = arith.constant 0 : i32
    %c0_i32_0 = arith.constant 0 : i32
    %c0_i32_1 = arith.constant 0 : i32
    return %c0_i32, %c0_i32_0 : i32, i32
  }
  func.func @transform_2(%arg0: i32) -> (i32, i32) {
    %c0_i32 = arith.constant 0 : i32
    %c0_i32_0 = arith.constant 0 : i32
    %c0_i32_1 = arith.constant 0 : i32
    return %c0_i32, %c0_i32_0 : i32, i32
  }
  func.func @transform_3(%arg0: i32) -> (i32, i32) {
    %c0_i32 = arith.constant 0 : i32
    %c0_i32_0 = arith.constant 0 : i32
    %c0_i32_1 = arith.constant 0 : i32
    return %c0_i32, %c0_i32_0 : i32, i32
  }
  func.func @transform_4(%arg0: i32) -> (i32, i32) {
    %c0_i32 = arith.constant 0 : i32
    %c0_i32_0 = arith.constant 0 : i32
    return %c0_i32, %arg0 : i32, i32
  }
}

</mosaic_0001>

<llo_original>
// kernel: tpu_custom_call.1
$region0: #{tpu_custom_call.1}
  #allocation0 [shape = 'u32[]', space=smem, size = 0x4, offset = 0x4, fixed_abs, tag = 'smem constant byte address 0x4 - core index']
  #allocation1 [shape = 'u32[144,128]{1,0:T(1,128)}', space=vmem, size = 0x12000, scoped, tag = 'internal scratch']
  %s0 = inlined_call_operand.vmem [shape: f32[14,300], index: 0, kind: input, shape index: {}]
  %s1 = inlined_call_operand.vmem [shape: f32[28,14], index: 1, kind: input, shape index: {}]
  %s2 = inlined_call_operand.vmem [shape: f32[28,28], index: 2, kind: input, shape index: {}]
  %s3 = inlined_call_operand.vmem [shape: f32[28,1], index: 3, kind: input, shape index: {}]
  %s4 = inlined_call_operand.hbm [shape: f32[28,300], index: 4, kind: output, shape index: {}]
  %s5 = sld [smem:[#allocation0]]
  $region87: #{tpu_custom_call.1} parent=0
    _
  %s7 = ssub.s32 1, %s5
  %s8 = scalar_select 0, %s7, %s5
  $region1: #{tpu_custom_call.1} parent=0
    #allocation2 [shape = 'u8[16384]{0}', space=vmem, size = 0x4000, scoped, tag = 'input window, operand 0']
    #allocation3 [shape = 'u8[32768]{0}', space=vmem, size = 0x8000, scoped, tag = 'output window, operand 0']
    #allocation4 [shape = 's32[2]{0}', space=sflag, size = 0x8, scoped, tag = 'scoped memory for tpu_custom_call.1']
    %9 = vsyncpa [#allocation4], 0
    %s10 = scalar_lea.sflag [#allocation4], 1
    %11 = vsyncpa %s10, 0
    loop: start=0, step=1, limit=5
    $region2: #{tpu_custom_call.1} parent=1 // loop_pre_header
      _
    $region3: #{tpu_custom_call.1} parent=1 // loop_header
      %s13 = sphi 0, %s17
      %p14 = scmp.ge.s32.totalorder %s13, 5
      %s23 = sphi 0, %s25
      %s26 = sphi 0, %s23
      %s27 = sphi 0, %s26
      %s43 = sphi 0, %s27
      %s47 = sphi 0, %s47
      %s49 = sphi 0, %s47
      %s50 = sphi 0, %s49
      %s64 = sphi 0, %s50
      %s68 = sphi 0, %s68
      %s70 = sphi 0, %s68
      %s71 = sphi 0, %s70
      %s85 = sphi 0, %s71
      %s89 = sphi 0, %s89
      %s91 = sphi 0, %s89
      %s92 = sphi 0, %s91
      %s106 = sphi 0, %s92
      %s112 = sphi 0, %s114
      %s115 = sphi 0, %s112
      %s116 = sphi 0, %s115
      %s132 = sphi 0, %s116
    $region4: #{tpu_custom_call.1} parent=1 // loop_header_branch
      %16 = sbr.rel (%p14) target = $region8
    $region5: #{tpu_custom_call.1} parent=1 // loop_body
      %s18 = ssub.s32 %s13, 1
      %s19 = ssub.s32 %s13, 2
      %s20 = sadd.s32 %s13, 1
      %s21 = ssub.s32 %s13, %s20
      %p22 = scmp.eq.s32.totalorder %s21, 0
      %s24 = sadd.s32 %s23, 1
      %s25 = scalar_select %p22, %s23, %s24
      %p28 = pneg %p22
      %p29 = scmp.eq.s32.totalorder %s13, 2
      %p30 = por %p28, %p29
      %p31 = scmp.ne.s32.totalorder %s23, %s26
      %p32 = scmp.eq.s32.totalorder %s13, 0
      %p33 = por %p31, %p32
      %p34 = scmp.ne.s32.totalorder %s23, %s26
      %p35 = scmp.eq.s32.totalorder %s18, 2
      %p36 = por %p34, %p35
      %p37 = scmp.ne.s32.totalorder %s26, %s27
      %p38 = scmp.eq.s32.totalorder %s18, 0
      %p39 = por %p37, %p38
      %p40 = scmp.ne.s32.totalorder %s26, %s27
      %p41 = scmp.eq.s32.totalorder %s19, 2
      %p42 = por %p40, %p41
      %p44 = scmp.ne.s32.totalorder %s27, %s43
      %p45 = scmp.eq.s32.totalorder %s19, 0
      %p46 = por %p44, %p45
      %s48 = sadd.s32 %s47, 1
      %p51 = scmp.eq.s32.totalorder %s13, 2
      %p52 = scmp.ne.s32.totalorder %s47, %s49
      %p53 = scmp.eq.s32.totalorder %s13, 0
      %p54 = por %p52, %p53
      %p55 = scmp.ne.s32.totalorder %s47, %s49
      %p56 = scmp.eq.s32.totalorder %s18, 2
      %p57 = por %p55, %p56
      %p58 = scmp.ne.s32.totalorder %s49, %s50
      %p59 = scmp.eq.s32.totalorder %s18, 0
      %p60 = por %p58, %p59
      %p61 = scmp.ne.s32.totalorder %s49, %s50
      %p62 = scmp.eq.s32.totalorder %s19, 2
      %p63 = por %p61, %p62
      %p65 = scmp.ne.s32.totalorder %s50, %s64
      %p66 = scmp.eq.s32.totalorder %s19, 0
      %p67 = por %p65, %p66
      %s69 = sadd.s32 %s68, 1
      %p72 = scmp.eq.s32.totalorder %s13, 2
      %p73 = scmp.ne.s32.totalorder %s68, %s70
      %p74 = scmp.eq.s32.totalorder %s13, 0
      %p75 = por %p73, %p74
      %p76 = scmp.ne.s32.totalorder %s68, %s70
      %p77 = scmp.eq.s32.totalorder %s18, 2
      %p78 = por %p76, %p77
      %p79 = scmp.ne.s32.totalorder %s70, %s71
      %p80 = scmp.eq.s32.totalorder %s18, 0
      %p81 = por %p79, %p80
      %p82 = scmp.ne.s32.totalorder %s70, %s71
      %p83 = scmp.eq.s32.totalorder %s19, 2
      %p84 = por %p82, %p83
      %p86 = scmp.ne.s32.totalorder %s71, %s85
      %p87 = scmp.eq.s32.totalorder %s19, 0
      %p88 = por %p86, %p87
      %s90 = sadd.s32 %s89, 1
      %p93 = scmp.eq.s32.totalorder %s13, 2
      %p94 = scmp.ne.s32.totalorder %s89, %s91
      %p95 = scmp.eq.s32.totalorder %s13, 0
      %p96 = por %p94, %p95
      %p97 = scmp.ne.s32.totalorder %s89, %s91
      %p98 = scmp.eq.s32.totalorder %s18, 2
      %p99 = por %p97, %p98
      %p100 = scmp.ne.s32.totalorder %s91, %s92
      %p101 = scmp.eq.s32.totalorder %s18, 0
      %p102 = por %p100, %p101
      %p103 = scmp.ne.s32.totalorder %s91, %s92
      %p104 = scmp.eq.s32.totalorder %s19, 2
      %p105 = por %p103, %p104
      %p107 = scmp.ne.s32.totalorder %s92, %s106
      %p108 = scmp.eq.s32.totalorder %s19, 0
      %p109 = por %p107, %p108
      %s110 = ssub.s32 %s13, %s20
      %p111 = scmp.eq.s32.totalorder %s110, 0
      %s113 = sadd.s32 %s112, 1
      %s114 = scalar_select %p111, %s112, %s113
      %p117 = pneg %p111
      %p118 = scmp.eq.s32.totalorder %s13, 2
      %p119 = por %p117, %p118
      %p120 = scmp.ne.s32.totalorder %s112, %s115
      %p121 = scmp.eq.s32.totalorder %s13, 0
      %p122 = por %p120, %p121
      %p123 = scmp.ne.s32.totalorder %s112, %s115
      %p124 = scmp.eq.s32.totalorder %s18, 2
      %p125 = por %p123, %p124
      %p126 = scmp.ne.s32.totalorder %s115, %s116
      %p127 = scmp.eq.s32.totalorder %s18, 0
      %p128 = por %p126, %p127
      %p129 = scmp.ne.s32.totalorder %s115, %s116
      %p130 = scmp.eq.s32.totalorder %s19, 2
      %p131 = por %p129, %p130
      %p133 = scmp.ne.s32.totalorder %s116, %s132
      %p134 = scmp.eq.s32.totalorder %s19, 0
      %p135 = por %p133, %p134
      %p136 = scmp.le.s32.totalorder 1, %s13
      %p137 = scmp.lt.s32.totalorder %s13, 4
      %p138 = pnand %p136, %p137
      %p139 = pneg %p138
      // Predicated region
      $region9: #{tpu_custom_call.1} parent=5 // pred_check
        _
      $region10: #{tpu_custom_call.1} parent=5 // pred_check_branch
        %141 = sbr.rel (%p138) target = $region12
      $region11: #{tpu_custom_call.1} parent=5 // pred_region
        %s142 = ssub.s32 %s13, 1
        // Predicated region
        $region13: #{tpu_custom_call.1} parent=11 // pred_check
          %p143 = pneg %p60
        $region14: #{tpu_custom_call.1} parent=11 // pred_check_branch
          %145 = sbr.rel (%p143) target = $region16
        $region15: #{tpu_custom_call.1} parent=11 // pred_region
          _
        $region16: #{tpu_custom_call.1} parent=11 // pred_fallthru
          _
        // Predicated region
        $region17: #{tpu_custom_call.1} parent=11 // pred_check
          %p146 = pneg %p81
        $region18: #{tpu_custom_call.1} parent=11 // pred_check_branch
          %148 = sbr.rel (%p146) target = $region20
        $region19: #{tpu_custom_call.1} parent=11 // pred_region
          _
        $region20: #{tpu_custom_call.1} parent=11 // pred_fallthru
          _
        // Predicated region
        $region21: #{tpu_custom_call.1} parent=11 // pred_check
          %p149 = pneg %p102
        $region22: #{tpu_custom_call.1} parent=11 // pred_check_branch
          %151 = sbr.rel (%p149) target = $region24
        $region23: #{tpu_custom_call.1} parent=11 // pred_region
          _
        $region24: #{tpu_custom_call.1} parent=11 // pred_fallthru
          _
      $region12: #{tpu_custom_call.1} parent=5 // pred_fallthru
        _
      %p152 = scmp.lt.s32.totalorder %s13, 3
      // Predicated region
      $region25: #{tpu_custom_call.1} parent=5 // pred_check
        %p153 = pneg %p152
      $region26: #{tpu_custom_call.1} parent=5 // pred_check_branch
        %155 = sbr.rel (%p153) target = $region28
      $region27: #{tpu_custom_call.1} parent=5 // pred_region
        // Predicated region
        $region29: #{tpu_custom_call.1} parent=27 // pred_check
          %p156 = pneg %p33
        $region30: #{tpu_custom_call.1} parent=27 // pred_check_branch
          %158 = sbr.rel (%p156) target = $region32
        $region31: #{tpu_custom_call.1} parent=27 // pred_region
          %s159 = sand.u32 %s23, 1
          %s160 = sand.u32 %s23, 1
          %s161 = smul.addr %s160, 16
          %s162 = scalar_lea.vmem [#allocation2], %s161
          %s163 = smul.addr %s13, 8
          %s164 = scalar_lea.vmem %s0, %s163
          // Predicated region
          $region33: #{tpu_custom_call.1} parent=31 // pred_check
            _
          $region34: #{tpu_custom_call.1} parent=31 // pred_check_branch
            %166 = sbr.rel (0) target = $region36
          $region35: #{tpu_custom_call.1} parent=31 // pred_region
            // Predicated region
            $region37: #{tpu_custom_call.1} parent=35 // pred_check
              _
            $region38: #{tpu_custom_call.1} parent=35 // pred_check_branch
              %168 = sbr.rel (0) target = $region40
            $region39: #{tpu_custom_call.1} parent=35 // pred_region
              // Predicated region
              $region52: #{tpu_custom_call.1} parent=39 // pred_check
                _
              $region53: #{tpu_custom_call.1} parent=39 // pred_check_branch
                %185 = sbr.rel (0) target = $region55
              $region54: #{tpu_custom_call.1} parent=39 // pred_region
                loop: start=0, step=1, limit=1
                $region56: #{tpu_custom_call.1} parent=54 // loop_pre_header
                  _
                $region57: #{tpu_custom_call.1} parent=54 // loop_header
                  %s187 = sphi 0, %s191
                  %p188 = scmp.ge.s32.totalorder %s187, 1
                  %s192 = sphi %s164, %s164
                  %s193 = sphi %s162, %s162
                $region58: #{tpu_custom_call.1} parent=54 // loop_header_branch
                  %190 = sbr.rel (%p188) target = $region62
                $region59: #{tpu_custom_call.1} parent=54 // loop_body
                  %v194 = vld [vmem:[%s192] sm:$0xff]
                  %195 = vst [vmem:[%s193] sm:$0xff] %v194
                  %v196 = vld [vmem:[%s192 + $0x18] sm:$0xff]
                  %197 = vst [vmem:[%s193 + $0x8] sm:$0xff] %v196
                $region60: #{tpu_custom_call.1} parent=54 // loop_footer
                  %s191 = sadd.s32 1, %s187
                $region61: #{tpu_custom_call.1} parent=54 // loop_footer_branch
                  %186 = sbr.rel target = $region57
                $region62: #{tpu_custom_call.1} parent=54 // loop_exit
                  _
              $region55: #{tpu_custom_call.1} parent=39 // pred_fallthru
                _
              // Predicated region
              $region63: #{tpu_custom_call.1} parent=39 // pred_check
                _
              $region64: #{tpu_custom_call.1} parent=39 // pred_check_branch
                %199 = sbr.rel target = $region66
              $region65: #{tpu_custom_call.1} parent=39 // pred_region
                _
              $region66: #{tpu_custom_call.1} parent=39 // pred_fallthru
                _
            $region40: #{tpu_custom_call.1} parent=35 // pred_fallthru
              _
            // Predicated region
            $region41: #{tpu_custom_call.1} parent=35 // pred_check
              _
            $region42: #{tpu_custom_call.1} parent=35 // pred_check_branch
              %170 = sbr.rel target = $region44
            $region43: #{tpu_custom_call.1} parent=35 // pred_region
              loop: start=0, step=1, limit=1
              $region45: #{tpu_custom_call.1} parent=43 // loop_pre_header
                _
              $region46: #{tpu_custom_call.1} parent=43 // loop_header
                %s173 = sphi 0, %s177
                %p174 = scmp.ge.s32.totalorder %s173, 1
                %s178 = sphi %s164, %s164
                %s179 = sphi %s162, %s162
              $region47: #{tpu_custom_call.1} parent=43 // loop_header_branch
                %176 = sbr.rel (%p174) target = $region51
              $region48: #{tpu_custom_call.1} parent=43 // loop_body
                %v180 = vld [vmem:[%s178] sm:$0xff]
                %181 = vst [vmem:[%s179] sm:$0xff] %v180
                %v182 = vld [vmem:[%s178 + $0x18] sm:$0xff]
                %183 = vst [vmem:[%s179 + $0x8] sm:$0xff] %v182
              $region49: #{tpu_custom_call.1} parent=43 // loop_footer
                %s177 = sadd.s32 1, %s173
              $region50: #{tpu_custom_call.1} parent=43 // loop_footer_branch
                %172 = sbr.rel target = $region46
              $region51: #{tpu_custom_call.1} parent=43 // loop_exit
                _
            $region44: #{tpu_custom_call.1} parent=35 // pred_fallthru
              _
          $region36: #{tpu_custom_call.1} parent=31 // pred_fallthru
            _
          %200 = vnop
        $region32: #{tpu_custom_call.1} parent=27 // pred_fallthru
          _
      $region28: #{tpu_custom_call.1} parent=5 // pred_fallthru
        _
      %p201 = scmp.le.s32.totalorder 1, %s13
      %p202 = scmp.lt.s32.totalorder %s13, 4
      %p203 = pnand %p201, %p202
      %p204 = pneg %p203
      // Predicated region
      $region67: #{tpu_custom_call.1} parent=5 // pred_check
        _
      $region68: #{tpu_custom_call.1} parent=5 // pred_check_branch
        %206 = sbr.rel (%p203) target = $region70
      $region69: #{tpu_custom_call.1} parent=5 // pred_region
        %s207 = ssub.s32 %s13, 1
        %s208 = sand.u32 %s26, 1
        %s209 = sand.u32 %s26, 1
        %s210 = smul.addr %s209, 16
        %s211 = scalar_lea.vmem [#allocation2], %s210
        // Predicated region
        $region71: #{tpu_custom_call.1} parent=69 // pred_check
          %p212 = pneg %p39
        $region72: #{tpu_custom_call.1} parent=69 // pred_check_branch
          %214 = sbr.rel (%p212) target = $region74
        $region73: #{tpu_custom_call.1} parent=69 // pred_region
          _
        $region74: #{tpu_custom_call.1} parent=69 // pred_fallthru
          _
        %s215 = sand.u32 %s26, 1
        %s216 = sand.u32 %s26, 1
        %s217 = smul.addr %s216, 16
        %s218 = scalar_lea.vmem [#allocation2], %s217
        %p219 = pneg %p39
        %p220 = pneg %p36
        %p221 = pneg %p60
        %p222 = pneg %p57
        %p223 = pneg %p81
        %p224 = pneg %p78
        %p225 = pneg %p102
        %p226 = pneg %p99
        %p227 = pneg %p128
        %p228 = pneg %p125
        %s229 = sand.u32 %s115, 1
        %s230 = scalar_lea.sflag [#allocation4], %s229
        %s231 = sand.u32 %s115, 1
        %s232 = smul.addr %s231, 32
        %s233 = scalar_lea.vmem [#allocation3], %s232
        %v234 = vld [vmem:[%s1] sm:$0xff]
        %v235 = vld [vmem:[%s1 + $0x8] sm:$0xff]
        %v236 = vld [vmem:[%s1 + $0x10] sm:$0xff]
        %v237 = vld [vmem:[%s1 + $0x18] sm:$0xf]
        %v238 = vld [vmem:[%s211] sm:$0xff]
        %v239 = vld [vmem:[%s211 + $0x8] sm:$0x3f]
        %v240 = vld [vmem:[%s3] sm:$0xff]
        %v241 = vld [vmem:[%s3 + $0x8] sm:$0xff]
        %v242 = vld [vmem:[%s3 + $0x10] sm:$0xff]
        %v243 = vld [vmem:[%s3 + $0x18] sm:$0xf]
        %245 = vset.pattern.permute.xlu0 0
        %246 = vperm.xlu0 %245, %v240
        %v247 = vpop.permute.xlu0 %246
        %250 = vset.pattern.permute.xlu0 0
        %251 = vperm.xlu0 %250, %v241
        %v252 = vpop.permute.xlu0 %251
        %255 = vset.pattern.permute.xlu0 0
        %256 = vperm.xlu0 %255, %v242
        %v257 = vpop.permute.xlu0 %256
        %260 = vset.pattern.permute.xlu0 0
        %261 = vperm.xlu0 %260, %v243
        %v262 = vpop.permute.xlu0 %261
        %vm264 = vcmask 113664
        %v266 = vsel %vm264, %v234, 0
        %v269 = vsel %vm264, %v235, 0
        %v272 = vsel %vm264, %v236, 0
        %v275 = vsel %vm264, %v237, 0
        %vm277 = vcmask 1045504
        %v279 = vsel %vm277, %v239, 0
        %281 = vmatprep.subr.mxu0 0.0
        %v282 = vand.u32 %v238, 4294901760
        %283 = vmatpush1.msra.mxu0 %v282
        %284 = vmatprep.subr.mxu0 0.0
        %v285 = vand.u32 %v279, 4294901760
        %286 = vmatpush1.msra.mxu0 %v285
        %287 = vmatprep.subr.mxu0 0.0
        %288 = vmatpush1.msra.mxu0 0.0
        %289 = vmatprep.subr.mxu0 0.0
        %290 = vmatpush1.msra.mxu0 0.0
        %291 = vmatprep.subr.mxu0 0.0
        %292 = vmatpush1.msra.mxu0 0.0
        %293 = vmatprep.subr.mxu0 0.0
        %294 = vmatpush1.msra.mxu0 0.0
        %295 = vmatprep.subr.mxu0 0.0
        %296 = vmatpush1.msra.mxu0 0.0
        %297 = vmatprep.subr.mxu0 0.0
        %298 = vmatpush1.msra.mxu0 0.0
        %299 = vmatprep.subr.mxu0 0.0
        %300 = vmatpush1.msra.mxu0 0.0
        %301 = vmatprep.subr.mxu0 0.0
        %302 = vmatpush1.msra.mxu0 0.0
        %303 = vmatprep.subr.mxu0 0.0
        %304 = vmatpush1.msra.mxu0 0.0
        %305 = vmatprep.subr.mxu0 0.0
        %306 = vmatpush1.msra.mxu0 0.0
        %307 = vmatprep.subr.mxu0 0.0
        %308 = vmatpush1.msra.mxu0 0.0
        %309 = vmatprep.subr.mxu0 0.0
        %310 = vmatpush1.msra.mxu0 0.0
        %311 = vmatprep.subr.mxu0 0.0
        %312 = vmatpush1.msra.mxu0 0.0
        %313 = vmatprep.subr.mxu0 0.0
        %314 = vmatpush1.msra.mxu0 0.0
        %315 = vmatprep.subr.mxu0 0.0
        %316 = vmatpush1.msra.mxu0 0.0
        %317 = vmatprep.subr.mxu0 0.0
        %318 = vmatpush1.msra.mxu0 0.0
        %319 = vmatprep.subr.mxu0 0.0
        %320 = vmatpush1.msra.mxu0 0.0
        %321 = vmatprep.subr.mxu0 0.0
        %322 = vmatpush1.msra.mxu0 0.0
        %323 = vmatprep.subr.mxu0 0.0
        %324 = vmatpush1.msra.mxu0 0.0
        %325 = vmatprep.subr.mxu0 0.0
        %326 = vmatpush1.msra.mxu0 0.0
        %327 = vmatprep.subr.mxu0 0.0
        %328 = vmatpush1.msra.mxu0 0.0
        %329 = vmatprep.subr.mxu0 0.0
        %330 = vmatpush1.msra.mxu0 0.0
        %331 = vmatprep.subr.mxu0 0.0
        %332 = vmatpush1.msra.mxu0 0.0
        %333 = vmatprep.subr.mxu0 0.0
        %334 = vmatpush1.msra.mxu0 0.0
        %335 = vmatprep.subr.mxu0 0.0
        %336 = vmatpush1.msra.mxu0 0.0
        %337 = vmatprep.subr.mxu0 0.0
        %338 = vmatpush1.msra.mxu0 0.0
        %339 = vmatprep.subr.mxu0 0.0
        %340 = vmatpush1.msra.mxu0 0.0
        %341 = vmatprep.subr.mxu0 0.0
        %342 = vmatpush1.msra.mxu0 0.0
        %343 = vmatprep.subr.mxu0 0.0
        %344 = vmatpush1.msra.mxu0 0.0
        %345 = vmatprep.subr.mxu0 0.0
        %346 = vmatpush1.msra.mxu0 0.0
        %347 = vmatprep.mubr.f32.mxu0 0.0
        %v348 = vand.u32 %v266, 4294901760
        %v349 = vsub.f32 %v266, %v348
        %v350 = vand.u32 %v349, 4294901760
        %v351 = vsub.f32 %v349, %v350
        %v352 = vand.u32 %v351, 4294901760
        %353 = vmatmul.mubr.f32.gmra.mrb[0].mxu0 %v352
        %v354 = vpop.f32.mrb[0].mxu0
        %v355 = vadd.f32 %v247, %v354
        %v356 = vpop.f32.mrb[0].mxu0
        %357 = vmatprep.mubr.f32.mxu0 0.0
        %v358 = vand.u32 %v269, 4294901760
        %v359 = vsub.f32 %v269, %v358
        %v360 = vand.u32 %v359, 4294901760
        %v361 = vsub.f32 %v359, %v360
        %v362 = vand.u32 %v361, 4294901760
        %363 = vmatmul.mubr.f32.gmra.mrb[0].mxu0 %v362
        %v364 = vpop.f32.mrb[0].mxu0
        %v365 = vadd.f32 %v252, %v364
        %v366 = vpop.f32.mrb[0].mxu0
        %367 = vmatprep.mubr.f32.mxu0 0.0
        %v368 = vand.u32 %v272, 4294901760
        %v369 = vsub.f32 %v272, %v368
        %v370 = vand.u32 %v369, 4294901760
        %v371 = vsub.f32 %v369, %v370
        %v372 = vand.u32 %v371, 4294901760
        %373 = vmatmul.mubr.f32.gmra.mrb[0].mxu0 %v372
        %v374 = vpop.f32.mrb[0].mxu0
        %v375 = vadd.f32 %v257, %v374
        %v376 = vpop.f32.mrb[0].mxu0
        %377 = vmatprep.mubr.f32.mxu0 0.0
        %v378 = vand.u32 %v275, 4294901760
        %v379 = vsub.f32 %v275, %v378
        %v380 = vand.u32 %v379, 4294901760
        %v381 = vsub.f32 %v379, %v380
        %v382 = vand.u32 %v381, 4294901760
        %383 = vmatmul.mubr.f32.gmra.mrb[0].mxu0 %v382
        %v384 = vpop.f32.mrb[0].mxu0
        %v385 = vadd.f32 %v262, %v384
        %v386 = vpop.f32.mrb[0].mxu0
        %387 = vdwg.mxu0
        %388 = vmatprep.subr.mxu0 0.0
        %v389 = vand.u32 %v238, 4294901760
        %v390 = vsub.f32 %v238, %v389
        %v391 = vand.u32 %v390, 4294901760
        %v392 = vsub.f32 %v390, %v391
        %v393 = vand.u32 %v392, 4294901760
        %394 = vmatpush1.msra.mxu0 %v393
        %395 = vmatprep.subr.mxu0 0.0
        %v396 = vand.u32 %v279, 4294901760
        %v397 = vsub.f32 %v279, %v396
        %v398 = vand.u32 %v397, 4294901760
        %v399 = vsub.f32 %v397, %v398
        %v400 = vand.u32 %v399, 4294901760
        %401 = vmatpush1.msra.mxu0 %v400
        %402 = vmatprep.subr.mxu0 0.0
        %403 = vmatpush1.msra.mxu0 0.0
        %404 = vmatprep.subr.mxu0 0.0
        %405 = vmatpush1.msra.mxu0 0.0
        %406 = vmatprep.subr.mxu0 0.0
        %407 = vmatpush1.msra.mxu0 0.0
        %408 = vmatprep.subr.mxu0 0.0
        %409 = vmatpush1.msra.mxu0 0.0
        %410 = vmatprep.subr.mxu0 0.0
        %411 = vmatpush1.msra.mxu0 0.0
        %412 = vmatprep.subr.mxu0 0.0
        %413 = vmatpush1.msra.mxu0 0.0
        %414 = vmatprep.subr.mxu0 0.0
        %415 = vmatpush1.msra.mxu0 0.0
        %416 = vmatprep.subr.mxu0 0.0
        %417 = vmatpush1.msra.mxu0 0.0
        %418 = vmatprep.subr.mxu0 0.0
        %419 = vmatpush1.msra.mxu0 0.0
        %420 = vmatprep.subr.mxu0 0.0
        %421 = vmatpush1.msra.mxu0 0.0
        %422 = vmatprep.subr.mxu0 0.0
        %423 = vmatpush1.msra.mxu0 0.0
        %424 = vmatprep.subr.mxu0 0.0
        %425 = vmatpush1.msra.mxu0 0.0
        %426 = vmatprep.subr.mxu0 0.0
        %427 = vmatpush1.msra.mxu0 0.0
        %428 = vmatprep.subr.mxu0 0.0
        %429 = vmatpush1.msra.mxu0 0.0
        %430 = vmatprep.subr.mxu0 0.0
        %431 = vmatpush1.msra.mxu0 0.0
        %432 = vmatprep.subr.mxu0 0.0
        %433 = vmatpush1.msra.mxu0 0.0
        %434 = vmatprep.subr.mxu0 0.0
        %435 = vmatpush1.msra.mxu0 0.0
        %436 = vmatprep.subr.mxu0 0.0
        %437 = vmatpush1.msra.mxu0 0.0
        %438 = vmatprep.subr.mxu0 0.0
        %439 = vmatpush1.msra.mxu0 0.0
        %440 = vmatprep.subr.mxu0 0.0
        %441 = vmatpush1.msra.mxu0 0.0
        %442 = vmatprep.subr.mxu0 0.0
        %443 = vmatpush1.msra.mxu0 0.0
        %444 = vmatprep.subr.mxu0 0.0
        %445 = vmatpush1.msra.mxu0 0.0
        %446 = vmatprep.subr.mxu0 0.0
        %447 = vmatpush1.msra.mxu0 0.0
        %448 = vmatprep.subr.mxu0 0.0
        %449 = vmatpush1.msra.mxu0 0.0
        %450 = vmatprep.subr.mxu0 0.0
        %451 = vmatpush1.msra.mxu0 0.0
        %452 = vmatprep.subr.mxu0 0.0
        %453 = vmatpush1.msra.mxu0 0.0
        %454 = vmatprep.subr.mxu0 0.0
        %455 = vmatpush1.msra.mxu0 0.0
        %456 = vmatprep.subr.mxu0 0.0
        %457 = vmatpush1.msra.mxu0 0.0
        %458 = vmatprep.subr.mxu0 0.0
        %459 = vmatpush1.msra.mxu0 0.0
        %460 = vmatprep.subr.mxu0 0.0
        %461 = vmatpush1.msra.mxu0 0.0
        %462 = vmatprep.mubr.f32.mxu0 0.0
        %v463 = vand.u32 %v266, 4294901760
        %464 = vmatmul.mubr.f32.gmra.mrb[0].mxu0 %v463
        %v465 = vpop.f32.mrb[0].mxu0
        %v466 = vadd.f32 %v355, %v465
        %v467 = vpop.f32.mrb[0].mxu0
        %468 = vmatprep.mubr.f32.mxu0 0.0
        %v469 = vand.u32 %v269, 4294901760
        %470 = vmatmul.mubr.f32.gmra.mrb[0].mxu0 %v469
        %v471 = vpop.f32.mrb[0].mxu0
        %v472 = vadd.f32 %v365, %v471
        %v473 = vpop.f32.mrb[0].mxu0
        %474 = vmatprep.mubr.f32.mxu0 0.0
        %v475 = vand.u32 %v272, 4294901760
        %476 = vmatmul.mubr.f32.gmra.mrb[0].mxu0 %v475
        %v477 = vpop.f32.mrb[0].mxu0
        %v478 = vadd.f32 %v375, %v477
        %v479 = vpop.f32.mrb[0].mxu0
        %480 = vmatprep.mubr.f32.mxu0 0.0
        %v481 = vand.u32 %v275, 4294901760
        %482 = vmatmul.mubr.f32.gmra.mrb[0].mxu0 %v481
        %v483 = vpop.f32.mrb[0].mxu0
        %v484 = vadd.f32 %v385, %v483
        %v485 = vpop.f32.mrb[0].mxu0
        %486 = vdwg.mxu0
        %487 = vmatprep.subr.mxu0 0.0
        %v488 = vand.u32 %v238, 4294901760
        %v489 = vsub.f32 %v238, %v488
        %490 = vmatpush1.msra.mxu0 %v489
        %491 = vmatprep.subr.mxu0 0.0
        %v492 = vand.u32 %v279, 4294901760
        %v493 = vsub.f32 %v279, %v492
        %494 = vmatpush1.msra.mxu0 %v493
        %495 = vmatprep.subr.mxu0 0.0
        %496 = vmatpush1.msra.mxu0 0.0
        %497 = vmatprep.subr.mxu0 0.0
        %498 = vmatpush1.msra.mxu0 0.0
        %499 = vmatprep.subr.mxu0 0.0
        %500 = vmatpush1.msra.mxu0 0.0
        %501 = vmatprep.subr.mxu0 0.0
        %502 = vmatpush1.msra.mxu0 0.0
        %503 = vmatprep.subr.mxu0 0.0
        %504 = vmatpush1.msra.mxu0 0.0
        %505 = vmatprep.subr.mxu0 0.0
        %506 = vmatpush1.msra.mxu0 0.0
        %507 = vmatprep.subr.mxu0 0.0
        %508 = vmatpush1.msra.mxu0 0.0
        %509 = vmatprep.subr.mxu0 0.0
        %510 = vmatpush1.msra.mxu0 0.0
        %511 = vmatprep.subr.mxu0 0.0
        %512 = vmatpush1.msra.mxu0 0.0
        %513 = vmatprep.subr.mxu0 0.0
        %514 = vmatpush1.msra.mxu0 0.0
        %515 = vmatprep.subr.mxu0 0.0
        %516 = vmatpush1.msra.mxu0 0.0
        %517 = vmatprep.subr.mxu0 0.0
        %518 = vmatpush1.msra.mxu0 0.0
        %519 = vmatprep.subr.mxu0 0.0
        %520 = vmatpush1.msra.mxu0 0.0
        %521 = vmatprep.subr.mxu0 0.0
        %522 = vmatpush1.msra.mxu0 0.0
        %523 = vmatprep.subr.mxu0 0.0
        %524 = vmatpush1.msra.mxu0 0.0
        %525 = vmatprep.subr.mxu0 0.0
        %526 = vmatpush1.msra.mxu0 0.0
        %527 = vmatprep.subr.mxu0 0.0
        %528 = vmatpush1.msra.mxu0 0.0
        %529 = vmatprep.subr.mxu0 0.0
        %530 = vmatpush1.msra.mxu0 0.0
        %531 = vmatprep.subr.mxu0 0.0
        %532 = vmatpush1.msra.mxu0 0.0
        %533 = vmatprep.subr.mxu0 0.0
        %534 = vmatpush1.msra.mxu0 0.0
        %535 = vmatprep.subr.mxu0 0.0
        %536 = vmatpush1.msra.mxu0 0.0
        %537 = vmatprep.subr.mxu0 0.0
        %538 = vmatpush1.msra.mxu0 0.0
        %539 = vmatprep.subr.mxu0 0.0
        %540 = vmatpush1.msra.mxu0 0.0
        %541 = vmatprep.subr.mxu0 0.0
        %542 = vmatpush1.msra.mxu0 0.0
        %543 = vmatprep.subr.mxu0 0.0
        %544 = vmatpush1.msra.mxu0 0.0
        %545 = vmatprep.subr.mxu0 0.0
        %546 = vmatpush1.msra.mxu0 0.0
        %547 = vmatprep.subr.mxu0 0.0
        %548 = vmatpush1.msra.mxu0 0.0
        %549 = vmatprep.subr.mxu0 0.0
        %550 = vmatpush1.msra.mxu0 0.0
        %551 = vmatprep.subr.mxu0 0.0
        %552 = vmatpush1.msra.mxu0 0.0
        %553 = vmatprep.subr.mxu0 0.0
        %554 = vmatpush1.msra.mxu0 0.0
        %555 = vmatprep.mubr.f32.mxu0 0.0
        %v556 = vand.u32 %v266, 4294901760
        %v557 = vsub.f32 %v266, %v556
        %558 = vmatmul.mubr.f32.gmra.mrb[0].mxu0 %v557
        %v559 = vpop.f32.mrb[0].mxu0
        %v560 = vadd.f32 %v466, %v559
        %v561 = vpop.f32.mrb[0].mxu0
        %562 = vmatprep.mubr.f32.mxu0 0.0
        %v563 = vand.u32 %v269, 4294901760
        %v564 = vsub.f32 %v269, %v563
        %565 = vmatmul.mubr.f32.gmra.mrb[0].mxu0 %v564
        %v566 = vpop.f32.mrb[0].mxu0
        %v567 = vadd.f32 %v472, %v566
        %v568 = vpop.f32.mrb[0].mxu0
        %569 = vmatprep.mubr.f32.mxu0 0.0
        %v570 = vand.u32 %v272, 4294901760
        %v571 = vsub.f32 %v272, %v570
        %572 = vmatmul.mubr.f32.gmra.mrb[0].mxu0 %v571
        %v573 = vpop.f32.mrb[0].mxu0
        %v574 = vadd.f32 %v478, %v573
        %v575 = vpop.f32.mrb[0].mxu0
        %576 = vmatprep.mubr.f32.mxu0 0.0
        %v577 = vand.u32 %v275, 4294901760
        %v578 = vsub.f32 %v275, %v577
        %579 = vmatmul.mubr.f32.gmra.mrb[0].mxu0 %v578
        %v580 = vpop.f32.mrb[0].mxu0
        %v581 = vadd.f32 %v484, %v580
        %v582 = vpop.f32.mrb[0].mxu0
        %583 = vdwg.mxu0
        %584 = vmatprep.subr.mxu0 0.0
        %v585 = vand.u32 %v238, 4294901760
        %586 = vmatpush1.msra.mxu0 %v585
        %587 = vmatprep.subr.mxu0 0.0
        %v588 = vand.u32 %v279, 4294901760
        %589 = vmatpush1.msra.mxu0 %v588
        %590 = vmatprep.subr.mxu0 0.0
        %591 = vmatpush1.msra.mxu0 0.0
        %592 = vmatprep.subr.mxu0 0.0
        %593 = vmatpush1.msra.mxu0 0.0
        %594 = vmatprep.subr.mxu0 0.0
        %595 = vmatpush1.msra.mxu0 0.0
        %596 = vmatprep.subr.mxu0 0.0
        %597 = vmatpush1.msra.mxu0 0.0
        %598 = vmatprep.subr.mxu0 0.0
        %599 = vmatpush1.msra.mxu0 0.0
        %600 = vmatprep.subr.mxu0 0.0
        %601 = vmatpush1.msra.mxu0 0.0
        %602 = vmatprep.subr.mxu0 0.0
        %603 = vmatpush1.msra.mxu0 0.0
        %604 = vmatprep.subr.mxu0 0.0
        %605 = vmatpush1.msra.mxu0 0.0
        %606 = vmatprep.subr.mxu0 0.0
        %607 = vmatpush1.msra.mxu0 0.0
        %608 = vmatprep.subr.mxu0 0.0
        %609 = vmatpush1.msra.mxu0 0.0
        %610 = vmatprep.subr.mxu0 0.0
        %611 = vmatpush1.msra.mxu0 0.0
        %612 = vmatprep.subr.mxu0 0.0
        %613 = vmatpush1.msra.mxu0 0.0
        %614 = vmatprep.subr.mxu0 0.0
        %615 = vmatpush1.msra.mxu0 0.0
        %616 = vmatprep.subr.mxu0 0.0
        %617 = vmatpush1.msra.mxu0 0.0
        %618 = vmatprep.subr.mxu0 0.0
        %619 = vmatpush1.msra.mxu0 0.0
        %620 = vmatprep.subr.mxu0 0.0
        %621 = vmatpush1.msra.mxu0 0.0
        %622 = vmatprep.subr.mxu0 0.0
        %623 = vmatpush1.msra.mxu0 0.0
        %624 = vmatprep.subr.mxu0 0.0
        %625 = vmatpush1.msra.mxu0 0.0
        %626 = vmatprep.subr.mxu0 0.0
        %627 = vmatpush1.msra.mxu0 0.0
        %628 = vmatprep.subr.mxu0 0.0
        %629 = vmatpush1.msra.mxu0 0.0
        %630 = vmatprep.subr.mxu0 0.0
        %631 = vmatpush1.msra.mxu0 0.0
        %632 = vmatprep.subr.mxu0 0.0
        %633 = vmatpush1.msra.mxu0 0.0
        %634 = vmatprep.subr.mxu0 0.0
        %635 = vmatpush1.msra.mxu0 0.0
        %636 = vmatprep.subr.mxu0 0.0
        %637 = vmatpush1.msra.mxu0 0.0
        %638 = vmatprep.subr.mxu0 0.0
        %639 = vmatpush1.msra.mxu0 0.0
        %640 = vmatprep.subr.mxu0 0.0
        %641 = vmatpush1.msra.mxu0 0.0
        %642 = vmatprep.subr.mxu0 0.0
        %643 = vmatpush1.msra.mxu0 0.0
        %644 = vmatprep.subr.mxu0 0.0
        %645 = vmatpush1.msra.mxu0 0.0
        %646 = vmatprep.subr.mxu0 0.0
        %647 = vmatpush1.msra.mxu0 0.0
        %648 = vmatprep.subr.mxu0 0.0
        %649 = vmatpush1.msra.mxu0 0.0
        %650 = vmatprep.mubr.f32.mxu0 0.0
        %v651 = vand.u32 %v266, 4294901760
        %v652 = vsub.f32 %v266, %v651
        %v653 = vand.u32 %v652, 4294901760
        %654 = vmatmul.mubr.f32.gmra.mrb[0].mxu0 %v653
        %v655 = vpop.f32.mrb[0].mxu0
        %v656 = vadd.f32 %v560, %v655
        %v657 = vpop.f32.mrb[0].mxu0
        %658 = vmatprep.mubr.f32.mxu0 0.0
        %v659 = vand.u32 %v269, 4294901760
        %v660 = vsub.f32 %v269, %v659
        %v661 = vand.u32 %v660, 4294901760
        %662 = vmatmul.mubr.f32.gmra.mrb[0].mxu0 %v661
        %v663 = vpop.f32.mrb[0].mxu0
        %v664 = vadd.f32 %v567, %v663
        %v665 = vpop.f32.mrb[0].mxu0
        %666 = vmatprep.mubr.f32.mxu0 0.0
        %v667 = vand.u32 %v272, 4294901760
        %v668 = vsub.f32 %v272, %v667
        %v669 = vand.u32 %v668, 4294901760
        %670 = vmatmul.mubr.f32.gmra.mrb[0].mxu0 %v669
        %v671 = vpop.f32.mrb[0].mxu0
        %v672 = vadd.f32 %v574, %v671
        %v673 = vpop.f32.mrb[0].mxu0
        %674 = vmatprep.mubr.f32.mxu0 0.0
        %v675 = vand.u32 %v275, 4294901760
        %v676 = vsub.f32 %v275, %v675
        %v677 = vand.u32 %v676, 4294901760
        %678 = vmatmul.mubr.f32.gmra.mrb[0].mxu0 %v677
        %v679 = vpop.f32.mrb[0].mxu0
        %v680 = vadd.f32 %v581, %v679
        %v681 = vpop.f32.mrb[0].mxu0
        %682 = vdwg.mxu0
        %683 = vmatprep.subr.mxu0 0.0
        %v684 = vand.u32 %v238, 4294901760
        %v685 = vsub.f32 %v238, %v684
        %v686 = vand.u32 %v685, 4294901760
        %687 = vmatpush1.msra.mxu0 %v686
        %688 = vmatprep.subr.mxu0 0.0
        %v689 = vand.u32 %v279, 4294901760
        %v690 = vsub.f32 %v279, %v689
        %v691 = vand.u32 %v690, 4294901760
        %692 = vmatpush1.msra.mxu0 %v691
        %693 = vmatprep.subr.mxu0 0.0
        %694 = vmatpush1.msra.mxu0 0.0
        %695 = vmatprep.subr.mxu0 0.0
        %696 = vmatpush1.msra.mxu0 0.0
        %697 = vmatprep.subr.mxu0 0.0
        %698 = vmatpush1.msra.mxu0 0.0
        %699 = vmatprep.subr.mxu0 0.0
        %700 = vmatpush1.msra.mxu0 0.0
        %701 = vmatprep.subr.mxu0 0.0
        %702 = vmatpush1.msra.mxu0 0.0
        %703 = vmatprep.subr.mxu0 0.0
        %704 = vmatpush1.msra.mxu0 0.0
        %705 = vmatprep.subr.mxu0 0.0
        %706 = vmatpush1.msra.mxu0 0.0
        %707 = vmatprep.subr.mxu0 0.0
        %708 = vmatpush1.msra.mxu0 0.0
        %709 = vmatprep.subr.mxu0 0.0
        %710 = vmatpush1.msra.mxu0 0.0
        %711 = vmatprep.subr.mxu0 0.0
        %712 = vmatpush1.msra.mxu0 0.0
        %713 = vmatprep.subr.mxu0 0.0
        %714 = vmatpush1.msra.mxu0 0.0
        %715 = vmatprep.subr.mxu0 0.0
        %716 = vmatpush1.msra.mxu0 0.0
        %717 = vmatprep.subr.mxu0 0.0
        %718 = vmatpush1.msra.mxu0 0.0
        %719 = vmatprep.subr.mxu0 0.0
        %720 = vmatpush1.msra.mxu0 0.0
        %721 = vmatprep.subr.mxu0 0.0
        %722 = vmatpush1.msra.mxu0 0.0
        %723 = vmatprep.subr.mxu0 0.0
        %724 = vmatpush1.msra.mxu0 0.0
        %725 = vmatprep.subr.mxu0 0.0
        %726 = vmatpush1.msra.mxu0 0.0
        %727 = vmatprep.subr.mxu0 0.0
        %728 = vmatpush1.msra.mxu0 0.0
        %729 = vmatprep.subr.mxu0 0.0
        %730 = vmatpush1.msra.mxu0 0.0
        %731 = vmatprep.subr.mxu0 0.0
        %732 = vmatpush1.msra.mxu0 0.0
        %733 = vmatprep.subr.mxu0 0.0
        %734 = vmatpush1.msra.mxu0 0.0
        %735 = vmatprep.subr.mxu0 0.0
        %736 = vmatpush1.msra.mxu0 0.0
        %737 = vmatprep.subr.mxu0 0.0
        %738 = vmatpush1.msra.mxu0 0.0
        %739 = vmatprep.subr.mxu0 0.0
        %740 = vmatpush1.msra.mxu0 0.0
        %741 = vmatprep.subr.mxu0 0.0
        %742 = vmatpush1.msra.mxu0 0.0
        %743 = vmatprep.subr.mxu0 0.0
        %744 = vmatpush1.msra.mxu0 0.0
        %745 = vmatprep.subr.mxu0 0.0
        %746 = vmatpush1.msra.mxu0 0.0
        %747 = vmatprep.subr.mxu0 0.0
        %748 = vmatpush1.msra.mxu0 0.0
        %749 = vmatprep.subr.mxu0 0.0
        %750 = vmatpush1.msra.mxu0 0.0
        %751 = vmatprep.subr.mxu0 0.0
        %752 = vmatpush1.msra.mxu0 0.0
        %753 = vmatprep.mubr.f32.mxu0 0.0
        %v754 = vand.u32 %v266, 4294901760
        %755 = vmatmul.mubr.f32.gmra.mrb[0].mxu0 %v754
        %v756 = vpop.f32.mrb[0].mxu0
        %v757 = vadd.f32 %v656, %v756
        %v758 = vpop.f32.mrb[0].mxu0
        %759 = vmatprep.mubr.f32.mxu0 0.0
        %v760 = vand.u32 %v269, 4294901760
        %761 = vmatmul.mubr.f32.gmra.mrb[0].mxu0 %v760
        %v762 = vpop.f32.mrb[0].mxu0
        %v763 = vadd.f32 %v664, %v762
        %v764 = vpop.f32.mrb[0].mxu0
        %765 = vmatprep.mubr.f32.mxu0 0.0
        %v766 = vand.u32 %v272, 4294901760
        %767 = vmatmul.mubr.f32.gmra.mrb[0].mxu0 %v766
        %v768 = vpop.f32.mrb[0].mxu0
        %v769 = vadd.f32 %v672, %v768
        %v770 = vpop.f32.mrb[0].mxu0
        %771 = vmatprep.mubr.f32.mxu0 0.0
        %v772 = vand.u32 %v275, 4294901760
        %773 = vmatmul.mubr.f32.gmra.mrb[0].mxu0 %v772
        %v774 = vpop.f32.mrb[0].mxu0
        %v775 = vadd.f32 %v680, %v774
        %v776 = vpop.f32.mrb[0].mxu0
        %777 = vdwg.mxu0
        %778 = vmatprep.subr.mxu0 0.0
        %v779 = vand.u32 %v238, 4294901760
        %780 = vmatpush1.msra.mxu0 %v779
        %781 = vmatprep.subr.mxu0 0.0
        %v782 = vand.u32 %v279, 4294901760
        %783 = vmatpush1.msra.mxu0 %v782
        %784 = vmatprep.subr.mxu0 0.0
        %785 = vmatpush1.msra.mxu0 0.0
        %786 = vmatprep.subr.mxu0 0.0
        %787 = vmatpush1.msra.mxu0 0.0
        %788 = vmatprep.subr.mxu0 0.0
        %789 = vmatpush1.msra.mxu0 0.0
        %790 = vmatprep.subr.mxu0 0.0
        %791 = vmatpush1.msra.mxu0 0.0
        %792 = vmatprep.subr.mxu0 0.0
        %793 = vmatpush1.msra.mxu0 0.0
        %794 = vmatprep.subr.mxu0 0.0
        %795 = vmatpush1.msra.mxu0 0.0
        %796 = vmatprep.subr.mxu0 0.0
        %797 = vmatpush1.msra.mxu0 0.0
        %798 = vmatprep.subr.mxu0 0.0
        %799 = vmatpush1.msra.mxu0 0.0
        %800 = vmatprep.subr.mxu0 0.0
        %801 = vmatpush1.msra.mxu0 0.0
        %802 = vmatprep.subr.mxu0 0.0
        %803 = vmatpush1.msra.mxu0 0.0
        %804 = vmatprep.subr.mxu0 0.0
        %805 = vmatpush1.msra.mxu0 0.0
        %806 = vmatprep.subr.mxu0 0.0
        %807 = vmatpush1.msra.mxu0 0.0
        %808 = vmatprep.subr.mxu0 0.0
        %809 = vmatpush1.msra.mxu0 0.0
        %810 = vmatprep.subr.mxu0 0.0
        %811 = vmatpush1.msra.mxu0 0.0
        %812 = vmatprep.subr.mxu0 0.0
        %813 = vmatpush1.msra.mxu0 0.0
        %814 = vmatprep.subr.mxu0 0.0
        %815 = vmatpush1.msra.mxu0 0.0
        %816 = vmatprep.subr.mxu0 0.0
        %817 = vmatpush1.msra.mxu0 0.0
        %818 = vmatprep.subr.mxu0 0.0
        %819 = vmatpush1.msra.mxu0 0.0
        %820 = vmatprep.subr.mxu0 0.0
        %821 = vmatpush1.msra.mxu0 0.0
        %822 = vmatprep.subr.mxu0 0.0
        %823 = vmatpush1.msra.mxu0 0.0
        %824 = vmatprep.subr.mxu0 0.0
        %825 = vmatpush1.msra.mxu0 0.0
        %826 = vmatprep.subr.mxu0 0.0
        %827 = vmatpush1.msra.mxu0 0.0
        %828 = vmatprep.subr.mxu0 0.0
        %829 = vmatpush1.msra.mxu0 0.0
        %830 = vmatprep.subr.mxu0 0.0
        %831 = vmatpush1.msra.mxu0 0.0
        %832 = vmatprep.subr.mxu0 0.0
        %833 = vmatpush1.msra.mxu0 0.0
        %834 = vmatprep.subr.mxu0 0.0
        %835 = vmatpush1.msra.mxu0 0.0
        %836 = vmatprep.subr.mxu0 0.0
        %837 = vmatpush1.msra.mxu0 0.0
        %838 = vmatprep.subr.mxu0 0.0
        %839 = vmatpush1.msra.mxu0 0.0
        %840 = vmatprep.subr.mxu0 0.0
        %841 = vmatpush1.msra.mxu0 0.0
        %842 = vmatprep.subr.mxu0 0.0
        %843 = vmatpush1.msra.mxu0 0.0
        %844 = vmatprep.mubr.f32.mxu0 0.0
        %v845 = vand.u32 %v266, 4294901760
        %846 = vmatmul.mubr.f32.gmra.mrb[0].mxu0 %v845
        %v847 = vpop.f32.mrb[0].mxu0
        %v848 = vadd.f32 %v757, %v847
        %v849 = vpop.f32.mrb[0].mxu0
        %850 = vmatprep.mubr.f32.mxu0 0.0
        %v851 = vand.u32 %v269, 4294901760
        %852 = vmatmul.mubr.f32.gmra.mrb[0].mxu0 %v851
        %v853 = vpop.f32.mrb[0].mxu0
        %v854 = vadd.f32 %v763, %v853
        %v855 = vpop.f32.mrb[0].mxu0
        %856 = vmatprep.mubr.f32.mxu0 0.0
        %v857 = vand.u32 %v272, 4294901760
        %858 = vmatmul.mubr.f32.gmra.mrb[0].mxu0 %v857
        %v859 = vpop.f32.mrb[0].mxu0
        %v860 = vadd.f32 %v769, %v859
        %v861 = vpop.f32.mrb[0].mxu0
        %862 = vmatprep.mubr.f32.mxu0 0.0
        %v863 = vand.u32 %v275, 4294901760
        %864 = vmatmul.mubr.f32.gmra.mrb[0].mxu0 %v863
        %v865 = vpop.f32.mrb[0].mxu0
        %v866 = vadd.f32 %v775, %v865
        %v867 = vpop.f32.mrb[0].mxu0
        %868 = vdwg.mxu0
        %v869 = vand.u32 2147483647, %v848
        %vm870 = vcmp.le.f32.partialorder %v869, 0.7853982
        %vm871 = vcmp.lt.s32.totalorder %v848, 0
        %v872 = vand.u32 %v848, 2139095040
        %v873 = vshrl.u32 %v872, 23
        %v874 = vsub.s32 %v873, 127
        %v875 = vand.u32 2147483647, %v848
        %v876 = vand.u32 %v875, 8388607
        %v877 = vor.u32 %v876, 8388608
        %v878 = vsub.s32 0, %v877
        %v879 = vadd.s32 %v874, 1
        %vm880 = vcmp.gt.s32.totalorder %v879, 0
        %v881 = vsel %vm880, %v879, 0
        %v882 = vshrl.u32 %v881, 5
        %v883 = vand.u32 %v881, 31
        %v884 = vsub.s32 32, %v883
        %v885 = vshrl.u32 683565275, %v884
        %v886 = vshll.u32 683565275, %v883
        %v887 = vshrl.u32 2475754826, %v884
        %v888 = vor.u32 %v886, %v887
        %v889 = vshll.u32 2475754826, %v883
        %v890 = vshrl.u32 2131351028, %v884
        %v891 = vor.u32 %v889, %v890
        %v892 = vshll.u32 2131351028, %v883
        %v893 = vshrl.u32 2102212464, %v884
        %v894 = vor.u32 %v892, %v893
        %v895 = vshll.u32 2102212464, %v883
        %v896 = vshrl.u32 920167782, %v884
        %v897 = vor.u32 %v895, %v896
        %v898 = vshll.u32 920167782, %v883
        %v899 = vshrl.u32 1326507024, %v884
        %v900 = vor.u32 %v898, %v899
        %vm901 = vcmp.lt.s32.totalorder %v882, 1
        %vm902 = vcmp.lt.s32.totalorder %v882, 2
        %vm903 = vcmp.lt.s32.totalorder %v882, 3
        %vm904 = vcmp.lt.s32.totalorder %v882, 4
        %v905 = vsel %vm901, %v885, %v888
        %v906 = vsel %vm904, %v894, 2102212464
        %v907 = vsel %vm903, %v891, %v906
        %v908 = vsel %vm902, %v905, %v907
        %v909 = vsel %vm901, %v888, %v891
        %v910 = vsel %vm904, %v897, 920167782
        %v911 = vsel %vm903, %v894, %v910
        %v912 = vsel %vm902, %v909, %v911
        %v913 = vsel %vm901, %v891, %v894
        %v914 = vsel %vm904, %v900, 1326507024
        %v915 = vsel %vm903, %v897, %v914
        %v916 = vsel %vm902, %v913, %v915
        %v917 = vshll.u32 %v877, 8
        %v918 = vmul.u32.u64.compose %v917, %v916
        %v919 = vextract.low.u32 %v918
        %v920 = vextract.high.u32 %v918
        %v921 = vmul.u32.u64.compose %v917, %v912
        %v922 = vextract.low.u32 %v921
        %v923 = vextract.high.u32 %v921
        %v924 = vmul.u32 %v917, %v908
        %v925 = vadd.s32 %v920, %v922
        %vm926 = vc.u32 %v920, %v922
        %v927 = vadd.s32 %v923, 1
        %v928 = vsel %vm926, %v927, %v923
        %v929 = vadd.s32 %v924, %v928
        %v930 = vadd.s32 %v929, 536870912
        %v931 = vshrl.u32 %v930, 30
        %v932 = vshll.u32 %v931, 30
        %v933 = vsub.s32 %v929, %v932
        %vm934 = vcmp.lt.s32.totalorder %v933, 0
        %v935 = vsub.s32 0, %v933
        %v936 = vsel %vm934, %v935, %v933
        %v937 = vclz %v936
        %v938 = vsub.s32 %v937, 2
        %vm939 = vcmp.gt.s32.totalorder 0, %v938
        %v940 = vsel %vm939, 0, %v938
        %v941 = vsub.s32 32, %v940
        %v942 = vshll.u32 %v933, %v940
        %v943 = vshrl.u32 %v925, %v941
        %v944 = vor.u32 %v942, %v943
        %v945 = vsub.s32 4294967266, %v940
        %v946 = vadd.s32 %v945, 127
        %v947 = vshll.u32 %v946, 23
        %v948 = vor.u32 4788187, %v947
        %v949 = vand.u32 2147483647, %v948
        %v951 = vcvt.s32.f32 %v944
        %v952 = vmul.f32 %v951, %v949
        %v953 = vxor.u32 %v952, 2147483648
        %v954 = vsel %vm871, %v953, %v952
        %v955 = vsub.s32 4, %v931
        %v956 = vsel %vm871, %v955, %v931
        %v957 = vsel %vm870, %v848, %v954
        %v958 = vsel %vm870, 0, %v956
        %v959 = vcosq.f32.pop %v957
        %v960 = vsinq.f32.pop %v957
        %vm961 = vweird.f32 %v848
        %v962 = vand.u32 %v958, 3
        %vm963 = vcmp.lt.s32.totalorder %v962, 2
        %vm964 = vcmp.eq.s32.totalorder %v962, 0
        %v965 = vxor.u32 %v960, 2147483648
        %v966 = vsel %vm964, %v959, %v965
        %vm967 = vcmp.eq.s32.totalorder %v962, 2
        %v968 = vxor.u32 %v959, 2147483648
        %v969 = vsel %vm967, %v968, %v960
        %v970 = vsel %vm963, %v966, %v969
        %v971 = vsel %vm961, nan, %v970
        %v972 = vand.u32 2147483647, %v854
        %vm973 = vcmp.le.f32.partialorder %v972, 0.7853982
        %vm974 = vcmp.lt.s32.totalorder %v854, 0
        %v975 = vand.u32 %v854, 2139095040
        %v976 = vshrl.u32 %v975, 23
        %v977 = vsub.s32 %v976, 127
        %v978 = vand.u32 2147483647, %v854
        %v979 = vand.u32 %v978, 8388607
        %v980 = vor.u32 %v979, 8388608
        %v981 = vsub.s32 0, %v980
        %v982 = vadd.s32 %v977, 1
        %vm983 = vcmp.gt.s32.totalorder %v982, 0
        %v984 = vsel %vm983, %v982, 0
        %v985 = vshrl.u32 %v984, 5
        %v986 = vand.u32 %v984, 31
        %v987 = vsub.s32 32, %v986
        %v988 = vshrl.u32 683565275, %v987
        %v989 = vshll.u32 683565275, %v986
        %v990 = vshrl.u32 2475754826, %v987
        %v991 = vor.u32 %v989, %v990
        %v992 = vshll.u32 2475754826, %v986
        %v993 = vshrl.u32 2131351028, %v987
        %v994 = vor.u32 %v992, %v993
        %v995 = vshll.u32 2131351028, %v986
        %v996 = vshrl.u32 2102212464, %v987
        %v997 = vor.u32 %v995, %v996
        %v998 = vshll.u32 2102212464, %v986
        %v999 = vshrl.u32 920167782, %v987
        %v1000 = vor.u32 %v998, %v999
        %v1001 = vshll.u32 920167782, %v986
        %v1002 = vshrl.u32 1326507024, %v987
        %v1003 = vor.u32 %v1001, %v1002
        %vm1004 = vcmp.lt.s32.totalorder %v985, 1
        %vm1005 = vcmp.lt.s32.totalorder %v985, 2
        %vm1006 = vcmp.lt.s32.totalorder %v985, 3
        %vm1007 = vcmp.lt.s32.totalorder %v985, 4
        %v1008 = vsel %vm1004, %v988, %v991
        %v1009 = vsel %vm1007, %v997, 2102212464
        %v1010 = vsel %vm1006, %v994, %v1009
        %v1011 = vsel %vm1005, %v1008, %v1010
        %v1012 = vsel %vm1004, %v991, %v994
        %v1013 = vsel %vm1007, %v1000, 920167782
        %v1014 = vsel %vm1006, %v997, %v1013
        %v1015 = vsel %vm1005, %v1012, %v1014
        %v1016 = vsel %vm1004, %v994, %v997
        %v1017 = vsel %vm1007, %v1003, 1326507024
        %v1018 = vsel %vm1006, %v1000, %v1017
        %v1019 = vsel %vm1005, %v1016, %v1018
        %v1020 = vshll.u32 %v980, 8
        %v1021 = vmul.u32.u64.compose %v1020, %v1019
        %v1022 = vextract.low.u32 %v1021
        %v1023 = vextract.high.u32 %v1021
        %v1024 = vmul.u32.u64.compose %v1020, %v1015
        %v1025 = vextract.low.u32 %v1024
        %v1026 = vextract.high.u32 %v1024
        %v1027 = vmul.u32 %v1020, %v1011
        %v1028 = vadd.s32 %v1023, %v1025
        %vm1029 = vc.u32 %v1023, %v1025
        %v1030 = vadd.s32 %v1026, 1
        %v1031 = vsel %vm1029, %v1030, %v1026
        %v1032 = vadd.s32 %v1027, %v1031
        %v1033 = vadd.s32 %v1032, 536870912
        %v1034 = vshrl.u32 %v1033, 30
        %v1035 = vshll.u32 %v1034, 30
        %v1036 = vsub.s32 %v1032, %v1035
        %vm1037 = vcmp.lt.s32.totalorder %v1036, 0
        %v1038 = vsub.s32 0, %v1036
        %v1039 = vsel %vm1037, %v1038, %v1036
        %v1040 = vclz %v1039
        %v1041 = vsub.s32 %v1040, 2
        %vm1042 = vcmp.gt.s32.totalorder 0, %v1041
        %v1043 = vsel %vm1042, 0, %v1041
        %v1044 = vsub.s32 32, %v1043
        %v1045 = vshll.u32 %v1036, %v1043
        %v1046 = vshrl.u32 %v1028, %v1044
        %v1047 = vor.u32 %v1045, %v1046
        %v1048 = vsub.s32 4294967266, %v1043
        %v1049 = vadd.s32 %v1048, 127
        %v1050 = vshll.u32 %v1049, 23
        %v1051 = vor.u32 4788187, %v1050
        %v1052 = vand.u32 2147483647, %v1051
        %v1054 = vcvt.s32.f32 %v1047
        %v1055 = vmul.f32 %v1054, %v1052
        %v1056 = vxor.u32 %v1055, 2147483648
        %v1057 = vsel %vm974, %v1056, %v1055
        %v1058 = vsub.s32 4, %v1034
        %v1059 = vsel %vm974, %v1058, %v1034
        %v1060 = vsel %vm973, %v854, %v1057
        %v1061 = vsel %vm973, 0, %v1059
        %v1062 = vcosq.f32.pop %v1060
        %v1063 = vsinq.f32.pop %v1060
        %vm1064 = vweird.f32 %v854
        %v1065 = vand.u32 %v1061, 3
        %vm1066 = vcmp.lt.s32.totalorder %v1065, 2
        %vm1067 = vcmp.eq.s32.totalorder %v1065, 0
        %v1068 = vxor.u32 %v1063, 2147483648
        %v1069 = vsel %vm1067, %v1062, %v1068
        %vm1070 = vcmp.eq.s32.totalorder %v1065, 2
        %v1071 = vxor.u32 %v1062, 2147483648
        %v1072 = vsel %vm1070, %v1071, %v1063
        %v1073 = vsel %vm1066, %v1069, %v1072
        %v1074 = vsel %vm1064, nan, %v1073
        %v1075 = vand.u32 2147483647, %v860
        %vm1076 = vcmp.le.f32.partialorder %v1075, 0.7853982
        %vm1077 = vcmp.lt.s32.totalorder %v860, 0
        %v1078 = vand.u32 %v860, 2139095040
        %v1079 = vshrl.u32 %v1078, 23
        %v1080 = vsub.s32 %v1079, 127
        %v1081 = vand.u32 2147483647, %v860
        %v1082 = vand.u32 %v1081, 8388607
        %v1083 = vor.u32 %v1082, 8388608
        %v1084 = vsub.s32 0, %v1083
        %v1085 = vadd.s32 %v1080, 1
        %vm1086 = vcmp.gt.s32.totalorder %v1085, 0
        %v1087 = vsel %vm1086, %v1085, 0
        %v1088 = vshrl.u32 %v1087, 5
        %v1089 = vand.u32 %v1087, 31
        %v1090 = vsub.s32 32, %v1089
        %v1091 = vshrl.u32 683565275, %v1090
        %v1092 = vshll.u32 683565275, %v1089
        %v1093 = vshrl.u32 2475754826, %v1090
        %v1094 = vor.u32 %v1092, %v1093
        %v1095 = vshll.u32 2475754826, %v1089
        %v1096 = vshrl.u32 2131351028, %v1090
        %v1097 = vor.u32 %v1095, %v1096
        %v1098 = vshll.u32 2131351028, %v1089
        %v1099 = vshrl.u32 2102212464, %v1090
        %v1100 = vor.u32 %v1098, %v1099
        %v1101 = vshll.u32 2102212464, %v1089
        %v1102 = vshrl.u32 920167782, %v1090
        %v1103 = vor.u32 %v1101, %v1102
        %v1104 = vshll.u32 920167782, %v1089
        %v1105 = vshrl.u32 1326507024, %v1090
        %v1106 = vor.u32 %v1104, %v1105
        %vm1107 = vcmp.lt.s32.totalorder %v1088, 1
        %vm1108 = vcmp.lt.s32.totalorder %v1088, 2
        %vm1109 = vcmp.lt.s32.totalorder %v1088, 3
        %vm1110 = vcmp.lt.s32.totalorder %v1088, 4
        %v1111 = vsel %vm1107, %v1091, %v1094
        %v1112 = vsel %vm1110, %v1100, 2102212464
        %v1113 = vsel %vm1109, %v1097, %v1112
        %v1114 = vsel %vm1108, %v1111, %v1113
        %v1115 = vsel %vm1107, %v1094, %v1097
        %v1116 = vsel %vm1110, %v1103, 920167782
        %v1117 = vsel %vm1109, %v1100, %v1116
        %v1118 = vsel %vm1108, %v1115, %v1117
        %v1119 = vsel %vm1107, %v1097, %v1100
        %v1120 = vsel %vm1110, %v1106, 1326507024
        %v1121 = vsel %vm1109, %v1103, %v1120
        %v1122 = vsel %vm1108, %v1119, %v1121
        %v1123 = vshll.u32 %v1083, 8
        %v1124 = vmul.u32.u64.compose %v1123, %v1122
        %v1125 = vextract.low.u32 %v1124
        %v1126 = vextract.high.u32 %v1124
        %v1127 = vmul.u32.u64.compose %v1123, %v1118
        %v1128 = vextract.low.u32 %v1127
        %v1129 = vextract.high.u32 %v1127
        %v1130 = vmul.u32 %v1123, %v1114
        %v1131 = vadd.s32 %v1126, %v1128
        %vm1132 = vc.u32 %v1126, %v1128
        %v1133 = vadd.s32 %v1129, 1
        %v1134 = vsel %vm1132, %v1133, %v1129
        %v1135 = vadd.s32 %v1130, %v1134
        %v1136 = vadd.s32 %v1135, 536870912
        %v1137 = vshrl.u32 %v1136, 30
        %v1138 = vshll.u32 %v1137, 30
        %v1139 = vsub.s32 %v1135, %v1138
        %vm1140 = vcmp.lt.s32.totalorder %v1139, 0
        %v1141 = vsub.s32 0, %v1139
        %v1142 = vsel %vm1140, %v1141, %v1139
        %v1143 = vclz %v1142
        %v1144 = vsub.s32 %v1143, 2
        %vm1145 = vcmp.gt.s32.totalorder 0, %v1144
        %v1146 = vsel %vm1145, 0, %v1144
        %v1147 = vsub.s32 32, %v1146
        %v1148 = vshll.u32 %v1139, %v1146
        %v1149 = vshrl.u32 %v1131, %v1147
        %v1150 = vor.u32 %v1148, %v1149
        %v1151 = vsub.s32 4294967266, %v1146
        %v1152 = vadd.s32 %v1151, 127
        %v1153 = vshll.u32 %v1152, 23
        %v1154 = vor.u32 4788187, %v1153
        %v1155 = vand.u32 2147483647, %v1154
        %v1157 = vcvt.s32.f32 %v1150
        %v1158 = vmul.f32 %v1157, %v1155
        %v1159 = vxor.u32 %v1158, 2147483648
        %v1160 = vsel %vm1077, %v1159, %v1158
        %v1161 = vsub.s32 4, %v1137
        %v1162 = vsel %vm1077, %v1161, %v1137
        %v1163 = vsel %vm1076, %v860, %v1160
        %v1164 = vsel %vm1076, 0, %v1162
        %v1165 = vcosq.f32.pop %v1163
        %v1166 = vsinq.f32.pop %v1163
        %vm1167 = vweird.f32 %v860
        %v1168 = vand.u32 %v1164, 3
        %vm1169 = vcmp.lt.s32.totalorder %v1168, 2
        %vm1170 = vcmp.eq.s32.totalorder %v1168, 0
        %v1171 = vxor.u32 %v1166, 2147483648
        %v1172 = vsel %vm1170, %v1165, %v1171
        %vm1173 = vcmp.eq.s32.totalorder %v1168, 2
        %v1174 = vxor.u32 %v1165, 2147483648
        %v1175 = vsel %vm1173, %v1174, %v1166
        %v1176 = vsel %vm1169, %v1172, %v1175
        %v1177 = vsel %vm1167, nan, %v1176
        %v1178 = vand.u32 2147483647, %v866
        %vm1179 = vcmp.le.f32.partialorder %v1178, 0.7853982
        %vm1180 = vcmp.lt.s32.totalorder %v866, 0
        %v1181 = vand.u32 %v866, 2139095040
        %v1182 = vshrl.u32 %v1181, 23
        %v1183 = vsub.s32 %v1182, 127
        %v1184 = vand.u32 2147483647, %v866
        %v1185 = vand.u32 %v1184, 8388607
        %v1186 = vor.u32 %v1185, 8388608
        %v1187 = vsub.s32 0, %v1186
        %v1188 = vadd.s32 %v1183, 1
        %vm1189 = vcmp.gt.s32.totalorder %v1188, 0
        %v1190 = vsel %vm1189, %v1188, 0
        %v1191 = vshrl.u32 %v1190, 5
        %v1192 = vand.u32 %v1190, 31
        %v1193 = vsub.s32 32, %v1192
        %v1194 = vshrl.u32 683565275, %v1193
        %v1195 = vshll.u32 683565275, %v1192
        %v1196 = vshrl.u32 2475754826, %v1193
        %v1197 = vor.u32 %v1195, %v1196
        %v1198 = vshll.u32 2475754826, %v1192
        %v1199 = vshrl.u32 2131351028, %v1193
        %v1200 = vor.u32 %v1198, %v1199
        %v1201 = vshll.u32 2131351028, %v1192
        %v1202 = vshrl.u32 2102212464, %v1193
        %v1203 = vor.u32 %v1201, %v1202
        %v1204 = vshll.u32 2102212464, %v1192
        %v1205 = vshrl.u32 920167782, %v1193
        %v1206 = vor.u32 %v1204, %v1205
        %v1207 = vshll.u32 920167782, %v1192
        %v1208 = vshrl.u32 1326507024, %v1193
        %v1209 = vor.u32 %v1207, %v1208
        %vm1210 = vcmp.lt.s32.totalorder %v1191, 1
        %vm1211 = vcmp.lt.s32.totalorder %v1191, 2
        %vm1212 = vcmp.lt.s32.totalorder %v1191, 3
        %vm1213 = vcmp.lt.s32.totalorder %v1191, 4
        %v1214 = vsel %vm1210, %v1194, %v1197
        %v1215 = vsel %vm1213, %v1203, 2102212464
        %v1216 = vsel %vm1212, %v1200, %v1215
        %v1217 = vsel %vm1211, %v1214, %v1216
        %v1218 = vsel %vm1210, %v1197, %v1200
        %v1219 = vsel %vm1213, %v1206, 920167782
        %v1220 = vsel %vm1212, %v1203, %v1219
        %v1221 = vsel %vm1211, %v1218, %v1220
        %v1222 = vsel %vm1210, %v1200, %v1203
        %v1223 = vsel %vm1213, %v1209, 1326507024
        %v1224 = vsel %vm1212, %v1206, %v1223
        %v1225 = vsel %vm1211, %v1222, %v1224
        %v1226 = vshll.u32 %v1186, 8
        %v1227 = vmul.u32.u64.compose %v1226, %v1225
        %v1228 = vextract.low.u32 %v1227
        %v1229 = vextract.high.u32 %v1227
        %v1230 = vmul.u32.u64.compose %v1226, %v1221
        %v1231 = vextract.low.u32 %v1230
        %v1232 = vextract.high.u32 %v1230
        %v1233 = vmul.u32 %v1226, %v1217
        %v1234 = vadd.s32 %v1229, %v1231
        %vm1235 = vc.u32 %v1229, %v1231
        %v1236 = vadd.s32 %v1232, 1
        %v1237 = vsel %vm1235, %v1236, %v1232
        %v1238 = vadd.s32 %v1233, %v1237
        %v1239 = vadd.s32 %v1238, 536870912
        %v1240 = vshrl.u32 %v1239, 30
        %v1241 = vshll.u32 %v1240, 30
        %v1242 = vsub.s32 %v1238, %v1241
        %vm1243 = vcmp.lt.s32.totalorder %v1242, 0
        %v1244 = vsub.s32 0, %v1242
        %v1245 = vsel %vm1243, %v1244, %v1242
        %v1246 = vclz %v1245
        %v1247 = vsub.s32 %v1246, 2
        %vm1248 = vcmp.gt.s32.totalorder 0, %v1247
        %v1249 = vsel %vm1248, 0, %v1247
        %v1250 = vsub.s32 32, %v1249
        %v1251 = vshll.u32 %v1242, %v1249
        %v1252 = vshrl.u32 %v1234, %v1250
        %v1253 = vor.u32 %v1251, %v1252
        %v1254 = vsub.s32 4294967266, %v1249
        %v1255 = vadd.s32 %v1254, 127
        %v1256 = vshll.u32 %v1255, 23
        %v1257 = vor.u32 4788187, %v1256
        %v1258 = vand.u32 2147483647, %v1257
        %v1260 = vcvt.s32.f32 %v1253
        %v1261 = vmul.f32 %v1260, %v1258
        %v1262 = vxor.u32 %v1261, 2147483648
        %v1263 = vsel %vm1180, %v1262, %v1261
        %v1264 = vsub.s32 4, %v1240
        %v1265 = vsel %vm1180, %v1264, %v1240
        %v1266 = vsel %vm1179, %v866, %v1263
        %v1267 = vsel %vm1179, 0, %v1265
        %v1268 = vcosq.f32.pop %v1266
        %v1269 = vsinq.f32.pop %v1266
        %vm1270 = vweird.f32 %v866
        %v1271 = vand.u32 %v1267, 3
        %vm1272 = vcmp.lt.s32.totalorder %v1271, 2
        %vm1273 = vcmp.eq.s32.totalorder %v1271, 0
        %v1274 = vxor.u32 %v1269, 2147483648
        %v1275 = vsel %vm1273, %v1268, %v1274
        %vm1276 = vcmp.eq.s32.totalorder %v1271, 2
        %v1277 = vxor.u32 %v1268, 2147483648
        %v1278 = vsel %vm1276, %v1277, %v1269
        %v1279 = vsel %vm1272, %v1275, %v1278
        %v1280 = vsel %vm1270, nan, %v1279
        %v1281 = vld [vmem:[%s2] sm:$0xff]
        %v1282 = vld [vmem:[%s2 + $0x8] sm:$0xff]
        %v1283 = vld [vmem:[%s2 + $0x10] sm:$0xff]
        %v1284 = vld [vmem:[%s2 + $0x18] sm:$0xf]
        %vm1285 = vcmask 228352
        %v1287 = vsel %vm1285, %v1281, 0
        %v1290 = vsel %vm1285, %v1282, 0
        %v1293 = vsel %vm1285, %v1283, 0
        %v1296 = vsel %vm1285, %v1284, 0
        %vm1298 = vcmask 1043456
        %v1300 = vsel %vm1298, %v1280, 0
        %1302 = vmatprep.subr.mxu0 0.0
        %v1303 = vand.u32 %v971, 4294901760
        %1304 = vmatpush1.msra.mxu0 %v1303
        %1305 = vmatprep.subr.mxu0 0.0
        %v1306 = vand.u32 %v1074, 4294901760
        %1307 = vmatpush1.msra.mxu0 %v1306
        %1308 = vmatprep.subr.mxu0 0.0
        %v1309 = vand.u32 %v1177, 4294901760
        %1310 = vmatpush1.msra.mxu0 %v1309
        %1311 = vmatprep.subr.mxu0 0.0
        %v1312 = vand.u32 %v1300, 4294901760
        %1313 = vmatpush1.msra.mxu0 %v1312
        %1314 = vmatprep.subr.mxu0 0.0
        %1315 = vmatpush1.msra.mxu0 0.0
        %1316 = vmatprep.subr.mxu0 0.0
        %1317 = vmatpush1.msra.mxu0 0.0
        %1318 = vmatprep.subr.mxu0 0.0
        %1319 = vmatpush1.msra.mxu0 0.0
        %1320 = vmatprep.subr.mxu0 0.0
        %1321 = vmatpush1.msra.mxu0 0.0
        %1322 = vmatprep.subr.mxu0 0.0
        %1323 = vmatpush1.msra.mxu0 0.0
        %1324 = vmatprep.subr.mxu0 0.0
        %1325 = vmatpush1.msra.mxu0 0.0
        %1326 = vmatprep.subr.mxu0 0.0
        %1327 = vmatpush1.msra.mxu0 0.0
        %1328 = vmatprep.subr.mxu0 0.0
        %1329 = vmatpush1.msra.mxu0 0.0
        %1330 = vmatprep.subr.mxu0 0.0
        %1331 = vmatpush1.msra.mxu0 0.0
        %1332 = vmatprep.subr.mxu0 0.0
        %1333 = vmatpush1.msra.mxu0 0.0
        %1334 = vmatprep.subr.mxu0 0.0
        %1335 = vmatpush1.msra.mxu0 0.0
        %1336 = vmatprep.subr.mxu0 0.0
        %1337 = vmatpush1.msra.mxu0 0.0
        %1338 = vmatprep.subr.mxu0 0.0
        %1339 = vmatpush1.msra.mxu0 0.0
        %1340 = vmatprep.subr.mxu0 0.0
        %1341 = vmatpush1.msra.mxu0 0.0
        %1342 = vmatprep.subr.mxu0 0.0
        %1343 = vmatpush1.msra.mxu0 0.0
        %1344 = vmatprep.subr.mxu0 0.0
        %1345 = vmatpush1.msra.mxu0 0.0
        %1346 = vmatprep.subr.mxu0 0.0
        %1347 = vmatpush1.msra.mxu0 0.0
        %1348 = vmatprep.subr.mxu0 0.0
        %1349 = vmatpush1.msra.mxu0 0.0
        %1350 = vmatprep.subr.mxu0 0.0
        %1351 = vmatpush1.msra.mxu0 0.0
        %1352 = vmatprep.subr.mxu0 0.0
        %1353 = vmatpush1.msra.mxu0 0.0
        %1354 = vmatprep.subr.mxu0 0.0
        %1355 = vmatpush1.msra.mxu0 0.0
        %1356 = vmatprep.subr.mxu0 0.0
        %1357 = vmatpush1.msra.mxu0 0.0
        %1358 = vmatprep.subr.mxu0 0.0
        %1359 = vmatpush1.msra.mxu0 0.0
        %1360 = vmatprep.subr.mxu0 0.0
        %1361 = vmatpush1.msra.mxu0 0.0
        %1362 = vmatprep.subr.mxu0 0.0
        %1363 = vmatpush1.msra.mxu0 0.0
        %1364 = vmatprep.subr.mxu0 0.0
        %1365 = vmatpush1.msra.mxu0 0.0
        %1366 = vmatprep.subr.mxu0 0.0
        %1367 = vmatpush1.msra.mxu0 0.0
        %1368 = vmatprep.subr.mxu0 0.0
        %1369 = vmatpush1.msra.mxu0 0.0
        %1370 = vmatprep.mubr.f32.mxu0 0.0
        %v1371 = vand.u32 %v1287, 4294901760
        %v1372 = vsub.f32 %v1287, %v1371
        %v1373 = vand.u32 %v1372, 4294901760
        %v1374 = vsub.f32 %v1372, %v1373
        %v1375 = vand.u32 %v1374, 4294901760
        %1376 = vmatmul.mubr.f32.gmra.mrb[0].mxu0 %v1375
        %v1377 = vpop.f32.mrb[0].mxu0
        %v1378 = vadd.f32 0.0, %v1377
        %v1379 = vpop.f32.mrb[0].mxu0
        %1380 = vmatprep.mubr.f32.mxu0 0.0
        %v1381 = vand.u32 %v1290, 4294901760
        %v1382 = vsub.f32 %v1290, %v1381
        %v1383 = vand.u32 %v1382, 4294901760
        %v1384 = vsub.f32 %v1382, %v1383
        %v1385 = vand.u32 %v1384, 4294901760
        %1386 = vmatmul.mubr.f32.gmra.mrb[0].mxu0 %v1385
        %v1387 = vpop.f32.mrb[0].mxu0
        %v1388 = vadd.f32 0.0, %v1387
        %v1389 = vpop.f32.mrb[0].mxu0
        %1390 = vmatprep.mubr.f32.mxu0 0.0
        %v1391 = vand.u32 %v1293, 4294901760
        %v1392 = vsub.f32 %v1293, %v1391
        %v1393 = vand.u32 %v1392, 4294901760
        %v1394 = vsub.f32 %v1392, %v1393
        %v1395 = vand.u32 %v1394, 4294901760
        %1396 = vmatmul.mubr.f32.gmra.mrb[0].mxu0 %v1395
        %v1397 = vpop.f32.mrb[0].mxu0
        %v1398 = vadd.f32 0.0, %v1397
        %v1399 = vpop.f32.mrb[0].mxu0
        %1400 = vmatprep.mubr.f32.mxu0 0.0
        %v1401 = vand.u32 %v1296, 4294901760
        %v1402 = vsub.f32 %v1296, %v1401
        %v1403 = vand.u32 %v1402, 4294901760
        %v1404 = vsub.f32 %v1402, %v1403
        %v1405 = vand.u32 %v1404, 4294901760
        %1406 = vmatmul.mubr.f32.gmra.mrb[0].mxu0 %v1405
        %v1407 = vpop.f32.mrb[0].mxu0
        %v1408 = vadd.f32 0.0, %v1407
        %v1409 = vpop.f32.mrb[0].mxu0
        %1410 = vdwg.mxu0
        %1411 = vmatprep.subr.mxu0 0.0
        %v1412 = vand.u32 %v971, 4294901760
        %v1413 = vsub.f32 %v971, %v1412
        %v1414 = vand.u32 %v1413, 4294901760
        %v1415 = vsub.f32 %v1413, %v1414
        %v1416 = vand.u32 %v1415, 4294901760
        %1417 = vmatpush1.msra.mxu0 %v1416
        %1418 = vmatprep.subr.mxu0 0.0
        %v1419 = vand.u32 %v1074, 4294901760
        %v1420 = vsub.f32 %v1074, %v1419
        %v1421 = vand.u32 %v1420, 4294901760
        %v1422 = vsub.f32 %v1420, %v1421
        %v1423 = vand.u32 %v1422, 4294901760
        %1424 = vmatpush1.msra.mxu0 %v1423
        %1425 = vmatprep.subr.mxu0 0.0
        %v1426 = vand.u32 %v1177, 4294901760
        %v1427 = vsub.f32 %v1177, %v1426
        %v1428 = vand.u32 %v1427, 4294901760
        %v1429 = vsub.f32 %v1427, %v1428
        %v1430 = vand.u32 %v1429, 4294901760
        %1431 = vmatpush1.msra.mxu0 %v1430
        %1432 = vmatprep.subr.mxu0 0.0
        %v1433 = vand.u32 %v1300, 4294901760
        %v1434 = vsub.f32 %v1300, %v1433
        %v1435 = vand.u32 %v1434, 4294901760
        %v1436 = vsub.f32 %v1434, %v1435
        %v1437 = vand.u32 %v1436, 4294901760
        %1438 = vmatpush1.msra.mxu0 %v1437
        %1439 = vmatprep.subr.mxu0 0.0
        %1440 = vmatpush1.msra.mxu0 0.0
        %1441 = vmatprep.subr.mxu0 0.0
        %1442 = vmatpush1.msra.mxu0 0.0
        %1443 = vmatprep.subr.mxu0 0.0
        %1444 = vmatpush1.msra.mxu0 0.0
        %1445 = vmatprep.subr.mxu0 0.0
        %1446 = vmatpush1.msra.mxu0 0.0
        %1447 = vmatprep.subr.mxu0 0.0
        %1448 = vmatpush1.msra.mxu0 0.0
        %1449 = vmatprep.subr.mxu0 0.0
        %1450 = vmatpush1.msra.mxu0 0.0
        %1451 = vmatprep.subr.mxu0 0.0
        %1452 = vmatpush1.msra.mxu0 0.0
        %1453 = vmatprep.subr.mxu0 0.0
        %1454 = vmatpush1.msra.mxu0 0.0
        %1455 = vmatprep.subr.mxu0 0.0
        %1456 = vmatpush1.msra.mxu0 0.0
        %1457 = vmatprep.subr.mxu0 0.0
        %1458 = vmatpush1.msra.mxu0 0.0
        %1459 = vmatprep.subr.mxu0 0.0
        %1460 = vmatpush1.msra.mxu0 0.0
        %1461 = vmatprep.subr.mxu0 0.0
        %1462 = vmatpush1.msra.mxu0 0.0
        %1463 = vmatprep.subr.mxu0 0.0
        %1464 = vmatpush1.msra.mxu0 0.0
        %1465 = vmatprep.subr.mxu0 0.0
        %1466 = vmatpush1.msra.mxu0 0.0
        %1467 = vmatprep.subr.mxu0 0.0
        %1468 = vmatpush1.msra.mxu0 0.0
        %1469 = vmatprep.subr.mxu0 0.0
        %1470 = vmatpush1.msra.mxu0 0.0
        %1471 = vmatprep.subr.mxu0 0.0
        %1472 = vmatpush1.msra.mxu0 0.0
        %1473 = vmatprep.subr.mxu0 0.0
        %1474 = vmatpush1.msra.mxu0 0.0
        %1475 = vmatprep.subr.mxu0 0.0
        %1476 = vmatpush1.msra.mxu0 0.0
        %1477 = vmatprep.subr.mxu0 0.0
        %1478 = vmatpush1.msra.mxu0 0.0
        %1479 = vmatprep.subr.mxu0 0.0
        %1480 = vmatpush1.msra.mxu0 0.0
        %1481 = vmatprep.subr.mxu0 0.0
        %1482 = vmatpush1.msra.mxu0 0.0
        %1483 = vmatprep.subr.mxu0 0.0
        %1484 = vmatpush1.msra.mxu0 0.0
        %1485 = vmatprep.subr.mxu0 0.0
        %1486 = vmatpush1.msra.mxu0 0.0
        %1487 = vmatprep.subr.mxu0 0.0
        %1488 = vmatpush1.msra.mxu0 0.0
        %1489 = vmatprep.subr.mxu0 0.0
        %1490 = vmatpush1.msra.mxu0 0.0
        %1491 = vmatprep.subr.mxu0 0.0
        %1492 = vmatpush1.msra.mxu0 0.0
        %1493 = vmatprep.subr.mxu0 0.0
        %1494 = vmatpush1.msra.mxu0 0.0
        %1495 = vmatprep.mubr.f32.mxu0 0.0
        %v1496 = vand.u32 %v1287, 4294901760
        %1497 = vmatmul.mubr.f32.gmra.mrb[0].mxu0 %v1496
        %v1498 = vpop.f32.mrb[0].mxu0
        %v1499 = vadd.f32 %v1378, %v1498
        %v1500 = vpop.f32.mrb[0].mxu0
        %1501 = vmatprep.mubr.f32.mxu0 0.0
        %v1502 = vand.u32 %v1290, 4294901760
        %1503 = vmatmul.mubr.f32.gmra.mrb[0].mxu0 %v1502
        %v1504 = vpop.f32.mrb[0].mxu0
        %v1505 = vadd.f32 %v1388, %v1504
        %v1506 = vpop.f32.mrb[0].mxu0
        %1507 = vmatprep.mubr.f32.mxu0 0.0
        %v1508 = vand.u32 %v1293, 4294901760
        %1509 = vmatmul.mubr.f32.gmra.mrb[0].mxu0 %v1508
        %v1510 = vpop.f32.mrb[0].mxu0
        %v1511 = vadd.f32 %v1398, %v1510
        %v1512 = vpop.f32.mrb[0].mxu0
        %1513 = vmatprep.mubr.f32.mxu0 0.0
        %v1514 = vand.u32 %v1296, 4294901760
        %1515 = vmatmul.mubr.f32.gmra.mrb[0].mxu0 %v1514
        %v1516 = vpop.f32.mrb[0].mxu0
        %v1517 = vadd.f32 %v1408, %v1516
        %v1518 = vpop.f32.mrb[0].mxu0
        %1519 = vdwg.mxu0
        %1520 = vmatprep.subr.mxu0 0.0
        %v1521 = vand.u32 %v971, 4294901760
        %v1522 = vsub.f32 %v971, %v1521
        %1523 = vmatpush1.msra.mxu0 %v1522
        %1524 = vmatprep.subr.mxu0 0.0
        %v1525 = vand.u32 %v1074, 4294901760
        %v1526 = vsub.f32 %v1074, %v1525
        %1527 = vmatpush1.msra.mxu0 %v1526
        %1528 = vmatprep.subr.mxu0 0.0
        %v1529 = vand.u32 %v1177, 4294901760
        %v1530 = vsub.f32 %v1177, %v1529
        %1531 = vmatpush1.msra.mxu0 %v1530
        %1532 = vmatprep.subr.mxu0 0.0
        %v1533 = vand.u32 %v1300, 4294901760
        %v1534 = vsub.f32 %v1300, %v1533
        %1535 = vmatpush1.msra.mxu0 %v1534
        %1536 = vmatprep.subr.mxu0 0.0
        %1537 = vmatpush1.msra.mxu0 0.0
        %1538 = vmatprep.subr.mxu0 0.0
        %1539 = vmatpush1.msra.mxu0 0.0
        %1540 = vmatprep.subr.mxu0 0.0
        %1541 = vmatpush1.msra.mxu0 0.0
        %1542 = vmatprep.subr.mxu0 0.0
        %1543 = vmatpush1.msra.mxu0 0.0
        %1544 = vmatprep.subr.mxu0 0.0
        %1545 = vmatpush1.msra.mxu0 0.0
        %1546 = vmatprep.subr.mxu0 0.0
        %1547 = vmatpush1.msra.mxu0 0.0
        %1548 = vmatprep.subr.mxu0 0.0
        %1549 = vmatpush1.msra.mxu0 0.0
        %1550 = vmatprep.subr.mxu0 0.0
        %1551 = vmatpush1.msra.mxu0 0.0
        %1552 = vmatprep.subr.mxu0 0.0
        %1553 = vmatpush1.msra.mxu0 0.0
        %1554 = vmatprep.subr.mxu0 0.0
        %1555 = vmatpush1.msra.mxu0 0.0
        %1556 = vmatprep.subr.mxu0 0.0
        %1557 = vmatpush1.msra.mxu0 0.0
        %1558 = vmatprep.subr.mxu0 0.0
        %1559 = vmatpush1.msra.mxu0 0.0
        %1560 = vmatprep.subr.mxu0 0.0
        %1561 = vmatpush1.msra.mxu0 0.0
        %1562 = vmatprep.subr.mxu0 0.0
        %1563 = vmatpush1.msra.mxu0 0.0
        %1564 = vmatprep.subr.mxu0 0.0
        %1565 = vmatpush1.msra.mxu0 0.0
        %1566 = vmatprep.subr.mxu0 0.0
        %1567 = vmatpush1.msra.mxu0 0.0
        %1568 = vmatprep.subr.mxu0 0.0
        %1569 = vmatpush1.msra.mxu0 0.0
        %1570 = vmatprep.subr.mxu0 0.0
        %1571 = vmatpush1.msra.mxu0 0.0
        %1572 = vmatprep.subr.mxu0 0.0
        %1573 = vmatpush1.msra.mxu0 0.0
        %1574 = vmatprep.subr.mxu0 0.0
        %1575 = vmatpush1.msra.mxu0 0.0
        %1576 = vmatprep.subr.mxu0 0.0
        %1577 = vmatpush1.msra.mxu0 0.0
        %1578 = vmatprep.subr.mxu0 0.0
        %1579 = vmatpush1.msra.mxu0 0.0
        %1580 = vmatprep.subr.mxu0 0.0
        %1581 = vmatpush1.msra.mxu0 0.0
        %1582 = vmatprep.subr.mxu0 0.0
        %1583 = vmatpush1.msra.mxu0 0.0
        %1584 = vmatprep.subr.mxu0 0.0
        %1585 = vmatpush1.msra.mxu0 0.0
        %1586 = vmatprep.subr.mxu0 0.0
        %1587 = vmatpush1.msra.mxu0 0.0
        %1588 = vmatprep.subr.mxu0 0.0
        %1589 = vmatpush1.msra.mxu0 0.0
        %1590 = vmatprep.subr.mxu0 0.0
        %1591 = vmatpush1.msra.mxu0 0.0
        %1592 = vmatprep.mubr.f32.mxu0 0.0
        %v1593 = vand.u32 %v1287, 4294901760
        %v1594 = vsub.f32 %v1287, %v1593
        %1595 = vmatmul.mubr.f32.gmra.mrb[0].mxu0 %v1594
        %v1596 = vpop.f32.mrb[0].mxu0
        %v1597 = vadd.f32 %v1499, %v1596
        %v1598 = vpop.f32.mrb[0].mxu0
        %1599 = vmatprep.mubr.f32.mxu0 0.0
        %v1600 = vand.u32 %v1290, 4294901760
        %v1601 = vsub.f32 %v1290, %v1600
        %1602 = vmatmul.mubr.f32.gmra.mrb[0].mxu0 %v1601
        %v1603 = vpop.f32.mrb[0].mxu0
        %v1604 = vadd.f32 %v1505, %v1603
        %v1605 = vpop.f32.mrb[0].mxu0
        %1606 = vmatprep.mubr.f32.mxu0 0.0
        %v1607 = vand.u32 %v1293, 4294901760
        %v1608 = vsub.f32 %v1293, %v1607
        %1609 = vmatmul.mubr.f32.gmra.mrb[0].mxu0 %v1608
        %v1610 = vpop.f32.mrb[0].mxu0
        %v1611 = vadd.f32 %v1511, %v1610
        %v1612 = vpop.f32.mrb[0].mxu0
        %1613 = vmatprep.mubr.f32.mxu0 0.0
        %v1614 = vand.u32 %v1296, 4294901760
        %v1615 = vsub.f32 %v1296, %v1614
        %1616 = vmatmul.mubr.f32.gmra.mrb[0].mxu0 %v1615
        %v1617 = vpop.f32.mrb[0].mxu0
        %v1618 = vadd.f32 %v1517, %v1617
        %v1619 = vpop.f32.mrb[0].mxu0
        %1620 = vdwg.mxu0
        %1621 = vmatprep.subr.mxu0 0.0
        %v1622 = vand.u32 %v971, 4294901760
        %1623 = vmatpush1.msra.mxu0 %v1622
        %1624 = vmatprep.subr.mxu0 0.0
        %v1625 = vand.u32 %v1074, 4294901760
        %1626 = vmatpush1.msra.mxu0 %v1625
        %1627 = vmatprep.subr.mxu0 0.0
        %v1628 = vand.u32 %v1177, 4294901760
        %1629 = vmatpush1.msra.mxu0 %v1628
        %1630 = vmatprep.subr.mxu0 0.0
        %v1631 = vand.u32 %v1300, 4294901760
        %1632 = vmatpush1.msra.mxu0 %v1631
        %1633 = vmatprep.subr.mxu0 0.0
        %1634 = vmatpush1.msra.mxu0 0.0
        %1635 = vmatprep.subr.mxu0 0.0
        %1636 = vmatpush1.msra.mxu0 0.0
        %1637 = vmatprep.subr.mxu0 0.0
        %1638 = vmatpush1.msra.mxu0 0.0
        %1639 = vmatprep.subr.mxu0 0.0
        %1640 = vmatpush1.msra.mxu0 0.0
        %1641 = vmatprep.subr.mxu0 0.0
        %1642 = vmatpush1.msra.mxu0 0.0
        %1643 = vmatprep.subr.mxu0 0.0
        %1644 = vmatpush1.msra.mxu0 0.0
        %1645 = vmatprep.subr.mxu0 0.0
        %1646 = vmatpush1.msra.mxu0 0.0
        %1647 = vmatprep.subr.mxu0 0.0
        %1648 = vmatpush1.msra.mxu0 0.0
        %1649 = vmatprep.subr.mxu0 0.0
        %1650 = vmatpush1.msra.mxu0 0.0
        %1651 = vmatprep.subr.mxu0 0.0
        %1652 = vmatpush1.msra.mxu0 0.0
        %1653 = vmatprep.subr.mxu0 0.0
        %1654 = vmatpush1.msra.mxu0 0.0
        %1655 = vmatprep.subr.mxu0 0.0
        %1656 = vmatpush1.msra.mxu0 0.0
        %1657 = vmatprep.subr.mxu0 0.0
        %1658 = vmatpush1.msra.mxu0 0.0
        %1659 = vmatprep.subr.mxu0 0.0
        %1660 = vmatpush1.msra.mxu0 0.0
        %1661 = vmatprep.subr.mxu0 0.0
        %1662 = vmatpush1.msra.mxu0 0.0
        %1663 = vmatprep.subr.mxu0 0.0
        %1664 = vmatpush1.msra.mxu0 0.0
        %1665 = vmatprep.subr.mxu0 0.0
        %1666 = vmatpush1.msra.mxu0 0.0
        %1667 = vmatprep.subr.mxu0 0.0
        %1668 = vmatpush1.msra.mxu0 0.0
        %1669 = vmatprep.subr.mxu0 0.0
        %1670 = vmatpush1.msra.mxu0 0.0
        %1671 = vmatprep.subr.mxu0 0.0
        %1672 = vmatpush1.msra.mxu0 0.0
        %1673 = vmatprep.subr.mxu0 0.0
        %1674 = vmatpush1.msra.mxu0 0.0
        %1675 = vmatprep.subr.mxu0 0.0
        %1676 = vmatpush1.msra.mxu0 0.0
        %1677 = vmatprep.subr.mxu0 0.0
        %1678 = vmatpush1.msra.mxu0 0.0
        %1679 = vmatprep.subr.mxu0 0.0
        %1680 = vmatpush1.msra.mxu0 0.0
        %1681 = vmatprep.subr.mxu0 0.0
        %1682 = vmatpush1.msra.mxu0 0.0
        %1683 = vmatprep.subr.mxu0 0.0
        %1684 = vmatpush1.msra.mxu0 0.0
        %1685 = vmatprep.subr.mxu0 0.0
        %1686 = vmatpush1.msra.mxu0 0.0
        %1687 = vmatprep.subr.mxu0 0.0
        %1688 = vmatpush1.msra.mxu0 0.0
        %1689 = vmatprep.mubr.f32.mxu0 0.0
        %v1690 = vand.u32 %v1287, 4294901760
        %v1691 = vsub.f32 %v1287, %v1690
        %v1692 = vand.u32 %v1691, 4294901760
        %1693 = vmatmul.mubr.f32.gmra.mrb[0].mxu0 %v1692
        %v1694 = vpop.f32.mrb[0].mxu0
        %v1695 = vadd.f32 %v1597, %v1694
        %v1696 = vpop.f32.mrb[0].mxu0
        %1697 = vmatprep.mubr.f32.mxu0 0.0
        %v1698 = vand.u32 %v1290, 4294901760
        %v1699 = vsub.f32 %v1290, %v1698
        %v1700 = vand.u32 %v1699, 4294901760
        %1701 = vmatmul.mubr.f32.gmra.mrb[0].mxu0 %v1700
        %v1702 = vpop.f32.mrb[0].mxu0
        %v1703 = vadd.f32 %v1604, %v1702
        %v1704 = vpop.f32.mrb[0].mxu0
        %1705 = vmatprep.mubr.f32.mxu0 0.0
        %v1706 = vand.u32 %v1293, 4294901760
        %v1707 = vsub.f32 %v1293, %v1706
        %v1708 = vand.u32 %v1707, 4294901760
        %1709 = vmatmul.mubr.f32.gmra.mrb[0].mxu0 %v1708
        %v1710 = vpop.f32.mrb[0].mxu0
        %v1711 = vadd.f32 %v1611, %v1710
        %v1712 = vpop.f32.mrb[0].mxu0
        %1713 = vmatprep.mubr.f32.mxu0 0.0
        %v1714 = vand.u32 %v1296, 4294901760
        %v1715 = vsub.f32 %v1296, %v1714
        %v1716 = vand.u32 %v1715, 4294901760
        %1717 = vmatmul.mubr.f32.gmra.mrb[0].mxu0 %v1716
        %v1718 = vpop.f32.mrb[0].mxu0
        %v1719 = vadd.f32 %v1618, %v1718
        %v1720 = vpop.f32.mrb[0].mxu0
        %1721 = vdwg.mxu0
        %1722 = vmatprep.subr.mxu0 0.0
        %v1723 = vand.u32 %v971, 4294901760
        %v1724 = vsub.f32 %v971, %v1723
        %v1725 = vand.u32 %v1724, 4294901760
        %1726 = vmatpush1.msra.mxu0 %v1725
        %1727 = vmatprep.subr.mxu0 0.0
        %v1728 = vand.u32 %v1074, 4294901760
        %v1729 = vsub.f32 %v1074, %v1728
        %v1730 = vand.u32 %v1729, 4294901760
        %1731 = vmatpush1.msra.mxu0 %v1730
        %1732 = vmatprep.subr.mxu0 0.0
        %v1733 = vand.u32 %v1177, 4294901760
        %v1734 = vsub.f32 %v1177, %v1733
        %v1735 = vand.u32 %v1734, 4294901760
        %1736 = vmatpush1.msra.mxu0 %v1735
        %1737 = vmatprep.subr.mxu0 0.0
        %v1738 = vand.u32 %v1300, 4294901760
        %v1739 = vsub.f32 %v1300, %v1738
        %v1740 = vand.u32 %v1739, 4294901760
        %1741 = vmatpush1.msra.mxu0 %v1740
        %1742 = vmatprep.subr.mxu0 0.0
        %1743 = vmatpush1.msra.mxu0 0.0
        %1744 = vmatprep.subr.mxu0 0.0
        %1745 = vmatpush1.msra.mxu0 0.0
        %1746 = vmatprep.subr.mxu0 0.0
        %1747 = vmatpush1.msra.mxu0 0.0
        %1748 = vmatprep.subr.mxu0 0.0
        %1749 = vmatpush1.msra.mxu0 0.0
        %1750 = vmatprep.subr.mxu0 0.0
        %1751 = vmatpush1.msra.mxu0 0.0
        %1752 = vmatprep.subr.mxu0 0.0
        %1753 = vmatpush1.msra.mxu0 0.0
        %1754 = vmatprep.subr.mxu0 0.0
        %1755 = vmatpush1.msra.mxu0 0.0
        %1756 = vmatprep.subr.mxu0 0.0
        %1757 = vmatpush1.msra.mxu0 0.0
        %1758 = vmatprep.subr.mxu0 0.0
        %1759 = vmatpush1.msra.mxu0 0.0
        %1760 = vmatprep.subr.mxu0 0.0
        %1761 = vmatpush1.msra.mxu0 0.0
        %1762 = vmatprep.subr.mxu0 0.0
        %1763 = vmatpush1.msra.mxu0 0.0
        %1764 = vmatprep.subr.mxu0 0.0
        %1765 = vmatpush1.msra.mxu0 0.0
        %1766 = vmatprep.subr.mxu0 0.0
        %1767 = vmatpush1.msra.mxu0 0.0
        %1768 = vmatprep.subr.mxu0 0.0
        %1769 = vmatpush1.msra.mxu0 0.0
        %1770 = vmatprep.subr.mxu0 0.0
        %1771 = vmatpush1.msra.mxu0 0.0
        %1772 = vmatprep.subr.mxu0 0.0
        %1773 = vmatpush1.msra.mxu0 0.0
        %1774 = vmatprep.subr.mxu0 0.0
        %1775 = vmatpush1.msra.mxu0 0.0
        %1776 = vmatprep.subr.mxu0 0.0
        %1777 = vmatpush1.msra.mxu0 0.0
        %1778 = vmatprep.subr.mxu0 0.0
        %1779 = vmatpush1.msra.mxu0 0.0
        %1780 = vmatprep.subr.mxu0 0.0
        %1781 = vmatpush1.msra.mxu0 0.0
        %1782 = vmatprep.subr.mxu0 0.0
        %1783 = vmatpush1.msra.mxu0 0.0
        %1784 = vmatprep.subr.mxu0 0.0
        %1785 = vmatpush1.msra.mxu0 0.0
        %1786 = vmatprep.subr.mxu0 0.0
        %1787 = vmatpush1.msra.mxu0 0.0
        %1788 = vmatprep.subr.mxu0 0.0
        %1789 = vmatpush1.msra.mxu0 0.0
        %1790 = vmatprep.subr.mxu0 0.0
        %1791 = vmatpush1.msra.mxu0 0.0
        %1792 = vmatprep.subr.mxu0 0.0
        %1793 = vmatpush1.msra.mxu0 0.0
        %1794 = vmatprep.subr.mxu0 0.0
        %1795 = vmatpush1.msra.mxu0 0.0
        %1796 = vmatprep.subr.mxu0 0.0
        %1797 = vmatpush1.msra.mxu0 0.0
        %1798 = vmatprep.mubr.f32.mxu0 0.0
        %v1799 = vand.u32 %v1287, 4294901760
        %1800 = vmatmul.mubr.f32.gmra.mrb[0].mxu0 %v1799
        %v1801 = vpop.f32.mrb[0].mxu0
        %v1802 = vadd.f32 %v1695, %v1801
        %v1803 = vpop.f32.mrb[0].mxu0
        %1804 = vmatprep.mubr.f32.mxu0 0.0
        %v1805 = vand.u32 %v1290, 4294901760
        %1806 = vmatmul.mubr.f32.gmra.mrb[0].mxu0 %v1805
        %v1807 = vpop.f32.mrb[0].mxu0
        %v1808 = vadd.f32 %v1703, %v1807
        %v1809 = vpop.f32.mrb[0].mxu0
        %1810 = vmatprep.mubr.f32.mxu0 0.0
        %v1811 = vand.u32 %v1293, 4294901760
        %1812 = vmatmul.mubr.f32.gmra.mrb[0].mxu0 %v1811
        %v1813 = vpop.f32.mrb[0].mxu0
        %v1814 = vadd.f32 %v1711, %v1813
        %v1815 = vpop.f32.mrb[0].mxu0
        %1816 = vmatprep.mubr.f32.mxu0 0.0
        %v1817 = vand.u32 %v1296, 4294901760
        %1818 = vmatmul.mubr.f32.gmra.mrb[0].mxu0 %v1817
        %v1819 = vpop.f32.mrb[0].mxu0
        %v1820 = vadd.f32 %v1719, %v1819
        %v1821 = vpop.f32.mrb[0].mxu0
        %1822 = vdwg.mxu0
        %1823 = vmatprep.subr.mxu0 0.0
        %v1824 = vand.u32 %v971, 4294901760
        %1825 = vmatpush1.msra.mxu0 %v1824
        %1826 = vmatprep.subr.mxu0 0.0
        %v1827 = vand.u32 %v1074, 4294901760
        %1828 = vmatpush1.msra.mxu0 %v1827
        %1829 = vmatprep.subr.mxu0 0.0
        %v1830 = vand.u32 %v1177, 4294901760
        %1831 = vmatpush1.msra.mxu0 %v1830
        %1832 = vmatprep.subr.mxu0 0.0
        %v1833 = vand.u32 %v1300, 4294901760
        %1834 = vmatpush1.msra.mxu0 %v1833
        %1835 = vmatprep.subr.mxu0 0.0
        %1836 = vmatpush1.msra.mxu0 0.0
        %1837 = vmatprep.subr.mxu0 0.0
        %1838 = vmatpush1.msra.mxu0 0.0
        %1839 = vmatprep.subr.mxu0 0.0
        %1840 = vmatpush1.msra.mxu0 0.0
        %1841 = vmatprep.subr.mxu0 0.0
        %1842 = vmatpush1.msra.mxu0 0.0
        %1843 = vmatprep.subr.mxu0 0.0
        %1844 = vmatpush1.msra.mxu0 0.0
        %1845 = vmatprep.subr.mxu0 0.0
        %1846 = vmatpush1.msra.mxu0 0.0
        %1847 = vmatprep.subr.mxu0 0.0
        %1848 = vmatpush1.msra.mxu0 0.0
        %1849 = vmatprep.subr.mxu0 0.0
        %1850 = vmatpush1.msra.mxu0 0.0
        %1851 = vmatprep.subr.mxu0 0.0
        %1852 = vmatpush1.msra.mxu0 0.0
        %1853 = vmatprep.subr.mxu0 0.0
        %1854 = vmatpush1.msra.mxu0 0.0
        %1855 = vmatprep.subr.mxu0 0.0
        %1856 = vmatpush1.msra.mxu0 0.0
        %1857 = vmatprep.subr.mxu0 0.0
        %1858 = vmatpush1.msra.mxu0 0.0
        %1859 = vmatprep.subr.mxu0 0.0
        %1860 = vmatpush1.msra.mxu0 0.0
        %1861 = vmatprep.subr.mxu0 0.0
        %1862 = vmatpush1.msra.mxu0 0.0
        %1863 = vmatprep.subr.mxu0 0.0
        %1864 = vmatpush1.msra.mxu0 0.0
        %1865 = vmatprep.subr.mxu0 0.0
        %1866 = vmatpush1.msra.mxu0 0.0
        %1867 = vmatprep.subr.mxu0 0.0
        %1868 = vmatpush1.msra.mxu0 0.0
        %1869 = vmatprep.subr.mxu0 0.0
        %1870 = vmatpush1.msra.mxu0 0.0
        %1871 = vmatprep.subr.mxu0 0.0
        %1872 = vmatpush1.msra.mxu0 0.0
        %1873 = vmatprep.subr.mxu0 0.0
        %1874 = vmatpush1.msra.mxu0 0.0
        %1875 = vmatprep.subr.mxu0 0.0
        %1876 = vmatpush1.msra.mxu0 0.0
        %1877 = vmatprep.subr.mxu0 0.0
        %1878 = vmatpush1.msra.mxu0 0.0
        %1879 = vmatprep.subr.mxu0 0.0
        %1880 = vmatpush1.msra.mxu0 0.0
        %1881 = vmatprep.subr.mxu0 0.0
        %1882 = vmatpush1.msra.mxu0 0.0
        %1883 = vmatprep.subr.mxu0 0.0
        %1884 = vmatpush1.msra.mxu0 0.0
        %1885 = vmatprep.subr.mxu0 0.0
        %1886 = vmatpush1.msra.mxu0 0.0
        %1887 = vmatprep.subr.mxu0 0.0
        %1888 = vmatpush1.msra.mxu0 0.0
        %1889 = vmatprep.subr.mxu0 0.0
        %1890 = vmatpush1.msra.mxu0 0.0
        %1891 = vmatprep.mubr.f32.mxu0 0.0
        %v1892 = vand.u32 %v1287, 4294901760
        %1893 = vmatmul.mubr.f32.gmra.mrb[0].mxu0 %v1892
        %v1894 = vpop.f32.mrb[0].mxu0
        %v1895 = vadd.f32 %v1802, %v1894
        %v1896 = vpop.f32.mrb[0].mxu0
        %1897 = vmatprep.mubr.f32.mxu0 0.0
        %v1898 = vand.u32 %v1290, 4294901760
        %1899 = vmatmul.mubr.f32.gmra.mrb[0].mxu0 %v1898
        %v1900 = vpop.f32.mrb[0].mxu0
        %v1901 = vadd.f32 %v1808, %v1900
        %v1902 = vpop.f32.mrb[0].mxu0
        %1903 = vmatprep.mubr.f32.mxu0 0.0
        %v1904 = vand.u32 %v1293, 4294901760
        %1905 = vmatmul.mubr.f32.gmra.mrb[0].mxu0 %v1904
        %v1906 = vpop.f32.mrb[0].mxu0
        %v1907 = vadd.f32 %v1814, %v1906
        %v1908 = vpop.f32.mrb[0].mxu0
        %1909 = vmatprep.mubr.f32.mxu0 0.0
        %v1910 = vand.u32 %v1296, 4294901760
        %1911 = vmatmul.mubr.f32.gmra.mrb[0].mxu0 %v1910
        %v1912 = vpop.f32.mrb[0].mxu0
        %v1913 = vadd.f32 %v1820, %v1912
        %v1914 = vpop.f32.mrb[0].mxu0
        %1915 = vdwg.mxu0
        %1916 = vst [vmem:[%s233] sm:$0xff] %v1895
        %1917 = vst [vmem:[%s233 + $0x8] sm:$0xff] %v1901
        %1918 = vst [vmem:[%s233 + $0x10] sm:$0xff] %v1907
        %1919 = vst [vmem:[%s233 + $0x18] sm:$0xf] %v1913
        %s1920 = sand.u32 %s115, 1
        %s1921 = scalar_lea.sflag [#allocation4], %s1920
        %s1922 = sand.u32 %s115, 1
        %s1923 = smul.addr %s1922, 32
        %s1924 = scalar_lea.vmem [#allocation3], %s1923
        // Predicated region
        $region75: #{tpu_custom_call.1} parent=69 // pred_check
          %p1925 = pneg %p125
        $region76: #{tpu_custom_call.1} parent=69 // pred_check_branch
          %1927 = sbr.rel (%p1925) target = $region78
        $region77: #{tpu_custom_call.1} parent=69 // pred_region
          %s1929 = ssub.s32 512, 512
          %1930 = vsyncadd %s1921, %s1929
          %s1931 = smul.addr %s18, 128
          %s1932 = scalar_lea.hbm %s4, %s1931
          %s1933 = sshll.u32 %s1924, 4
          %s1934 = int_to_ptr.vmem [resolvable:$true] %s1933
          %1939 = dma.vmem_to_hbm [thread:$0]  %s1934, 512, %s1932, %s1921, 128, 384, 8
        $region78: #{tpu_custom_call.1} parent=69 // pred_fallthru
          _
      $region70: #{tpu_custom_call.1} parent=5 // pred_fallthru
        _
      %p1940 = scmp.le.s32.totalorder 2, %s13
      // Predicated region
      $region79: #{tpu_custom_call.1} parent=5 // pred_check
        %p1941 = pneg %p1940
      $region80: #{tpu_custom_call.1} parent=5 // pred_check_branch
        %1943 = sbr.rel (%p1941) target = $region82
      $region81: #{tpu_custom_call.1} parent=5 // pred_region
        %s1944 = ssub.s32 %s13, 2
        // Predicated region
        $region83: #{tpu_custom_call.1} parent=81 // pred_check
          %p1945 = pneg %p131
        $region84: #{tpu_custom_call.1} parent=81 // pred_check_branch
          %1947 = sbr.rel (%p1945) target = $region86
        $region85: #{tpu_custom_call.1} parent=81 // pred_region
          %s1948 = sand.u32 %s116, 1
          %s1949 = scalar_lea.sflag [#allocation4], %s1948
          %s1950 = sand.u32 %s116, 1
          %s1951 = smul.addr %s1950, 32
          %s1952 = scalar_lea.vmem [#allocation3], %s1951
          %1953 = dma.done %s1949, 512
        $region86: #{tpu_custom_call.1} parent=81 // pred_fallthru
          _
      $region82: #{tpu_custom_call.1} parent=5 // pred_fallthru
        _
    $region6: #{tpu_custom_call.1} parent=1 // loop_footer
      %s17 = sadd.s32 1, %s13
    $region7: #{tpu_custom_call.1} parent=1 // loop_footer_branch
      %12 = sbr.rel target = $region3
    $region8: #{tpu_custom_call.1} parent=1 // loop_exit
      _
    %1954 = vsyncpa [#allocation4], 1
    %s1955 = scalar_lea.sflag [#allocation4], 1
    %1956 = vsyncpa %s1955, 1

</llo_original>
